<compile_context>
chip_gen: v7x
topology: tpu7x:2x2x1
jax: 0.10.0
libtpu: 0.0.40
codegen_flags: <defaults>
</compile_context>

<pallas_src>
import functools

import jax
import jax.numpy as jnp
from jax.experimental import pallas as pl
from jax.experimental.pallas import tpu as pltpu


def _round_up(a, m):
    return ((a + m - 1) // m) * m


def _fused_kernel(x_ref, w_ref, wr_fc_ref, wr_per_ref, o_ref, *, fc_rows):
    """One batch tile of the fused SimplePeriodicFC forward.

    Layout (batch on the lane axis, biases folded into the weights):
      x_ref     : (d_pad, TILE_B)   input tile (rows: d_in data, 1 ones, pad)
      w_ref     : (H_pad, d_pad)    fused [W_fc | 1-row | pad | W_per | pad]
      wr_fc_ref : (1, fc_rows)      regressor weights for the FC band (+ b_reg)
      wr_per_ref: (1, H_pad-fc_rows)regressor weights for the periodic band
      o_ref     : (1, TILE_B)       output tile (lane dense)
    """
    x = x_ref[...]                                            # (d_pad, T)

    # One fused matmul for both branches + all first-layer biases:
    # (H_pad, d_pad) @ (d_pad, T) -> (H_pad, T).
    pre = jnp.dot(w_ref[...], x, preferred_element_type=jnp.float32)

    # FC band: rows [0:fc_rows)  (fc_rows is a multiple of 8 -> aligned slice).
    h_fc = jnp.maximum(pre[:fc_rows, :], 0.0)
    # Periodic band: rows [fc_rows:H_pad) -> sin then relu, only on the
    # aligned 8-row band (half the transcendental work vs. a full-slab sin).
    h_per = jnp.maximum(jnp.sin(pre[fc_rows:, :]), 0.0)

    # Regressor as two tiny matmuls (avoids re-concatenating the bands).
    # b_reg is already folded into wr_fc via the constant-1 hidden row.
    out = (jnp.dot(wr_fc_ref[...], h_fc, preferred_element_type=jnp.float32)
           + jnp.dot(wr_per_ref[...], h_per, preferred_element_type=jnp.float32))
    o_ref[...] = out.astype(o_ref.dtype)                      # (1, T) lane dense


def _auto_tile_b(batch):
    """One tile on single-TC chips; two balanced tiles on v7x; cap for huge B."""
    n_split = 1
    try:
        kind = jax.devices()[0].device_kind.lower()
        if "7" in kind:          # v7x: 2 TensorCores per chip -> keep both busy
            n_split = 2
    except Exception:
        pass
    tile = _round_up(-(-batch // n_split), 128)
    return max(128, min(tile, 64 * 1024))


def simple_periodic_fc(x, params, *, tile_b=None):
    """Fused SimplePeriodicFC forward as a Pallas kernel.

    x: (B, input_dim) float32
    params: dict with keys w_fc, b_fc, w_per, b_per, w_reg, b_reg
            (Linear weights stored as (in_features, out_features)).
    """
    B, d_in = x.shape
    w_fc, b_fc = params["w_fc"], params["b_fc"]
    w_per, b_per = params["w_per"], params["b_per"]
    w_reg, b_reg = params["w_reg"], params["b_reg"]

    hp = w_fc.shape[1]                       # hidden - periodic (FC width)
    p = w_per.shape[1]                       # periodic width

    # Padded geometry: +1 input row for the ones/bias row, sublane-aligned;
    # FC band gets +1 row carrying b_reg via relu(1)=1, both bands 8-aligned.
    d_pad = _round_up(d_in + 1, 8)           # e.g. 10 -> 16
    fc_rows = _round_up(hp + 1, 8)           # e.g. 12(+1) -> 16
    per_rows = _round_up(p, 8)               # e.g. 4 -> 8
    H_pad = fc_rows + per_rows               # e.g. 24

    f32 = jnp.float32

    # ---- fused weights (biases folded in; zero rows/cols on the pads) ------
    w_cat = jnp.zeros((H_pad, d_pad), f32)
    w_cat = w_cat.at[:hp, :d_in].set(w_fc.T.astype(f32))
    w_cat = w_cat.at[:hp, d_in].set(b_fc.reshape(-1).astype(f32))
    w_cat = w_cat.at[hp, d_in].set(1.0)                    # constant-1 hidden row
    w_cat = w_cat.at[fc_rows:fc_rows + p, :d_in].set(w_per.T.astype(f32))
    w_cat = w_cat.at[fc_rows:fc_rows + p, d_in].set(b_per.reshape(-1).astype(f32))

    wr_fc = jnp.zeros((1, fc_rows), f32)
    wr_fc = wr_fc.at[0, :hp].set(w_reg[:hp, 0].astype(f32))
    wr_fc = wr_fc.at[0, hp].set(b_reg.reshape(()).astype(f32))   # b_reg * relu(1)
    wr_per = jnp.zeros((1, per_rows), f32)
    wr_per = wr_per.at[0, :p].set(w_reg[hp:hp + p, 0].astype(f32))

    # ---- input: transpose + ones row + pad, one fused pass under jit -------
    if tile_b is None:
        tile_b = _auto_tile_b(B)
    assert tile_b % 128 == 0, "batch tile must be lane-aligned (multiple of 128)"
    grid_b = pl.cdiv(B, tile_b)
    b_pad = grid_b * tile_b

    x_t = jnp.concatenate(
        [x.astype(f32).T, jnp.ones((1, B), f32)], axis=0)          # (d_in+1, B)
    x_t = jnp.pad(x_t, ((0, d_pad - d_in - 1), (0, b_pad - B)))    # (d_pad, b_pad)

    cost = pl.CostEstimate(
        flops=2 * H_pad * d_pad * b_pad + 2 * H_pad * b_pad,
        transcendentals=per_rows * b_pad,
        bytes_accessed=4 * (d_pad * b_pad + b_pad
                            + H_pad * d_pad + fc_rows + per_rows),
    )

    out = pl.pallas_call(
        functools.partial(_fused_kernel, fc_rows=fc_rows),
        out_shape=jax.ShapeDtypeStruct((1, b_pad), f32),
        grid_spec=pltpu.PrefetchScalarGridSpec(
            num_scalar_prefetch=0,
            grid=(grid_b,),
            in_specs=[
                # streamed batch tile
                pl.BlockSpec((d_pad, tile_b), lambda i: (0, i)),
                # tiny parameters: constant block index -> fetched once,
                # resident in VMEM across all grid steps.
                pl.BlockSpec((H_pad, d_pad), lambda i: (0, 0)),
                pl.BlockSpec((1, fc_rows), lambda i: (0, 0)),
                pl.BlockSpec((1, per_rows), lambda i: (0, 0)),
            ],
            out_specs=pl.BlockSpec((1, tile_b), lambda i: (0, i)),
        ),
        compiler_params=pltpu.CompilerParams(
            dimension_semantics=("parallel",),
        ),
        cost_estimate=cost,
    )(x_t, w_cat, wr_fc, wr_per)

    # Undo the lane-dense layout: (1, B_pad) -> (B, 1), matching PyTorch.
    return out[0, :B].reshape(B, 1)


def simple_periodic_fc_ref(x, params):
    """Pure-JAX reference mirroring the PyTorch forward exactly."""
    x1 = x @ params["w_fc"] + params["b_fc"]
    x2 = jnp.sin(x @ params["w_per"] + params["b_per"])
    h = jax.nn.relu(jnp.concatenate([x1, x2], axis=-1))
    return h @ params["w_reg"] + params["b_reg"]


def init_params(key, input_dim=1, hidden_dim=16, periodic_dim=4):
    """Deterministic synthetic parameter init matching the module's shapes."""
    k1, k2, k3, k4, k5, k6 = jax.random.split(key, 6)
    hp = hidden_dim - periodic_dim
    return {
        # fc_layers: Linear(input_dim, hidden-periodic)  (stored transposed)
        "w_fc": jax.random.normal(k1, (input_dim, hp), jnp.float32) * 0.5,
        "b_fc": jax.random.normal(k2, (hp,), jnp.float32) * 0.1,
        # periodic_layer: randn(input_dim, periodic_dim), randn(1, periodic_dim)
        "w_per": jax.random.normal(k3, (input_dim, periodic_dim), jnp.float32),
        "b_per": jax.random.normal(k4, (1, periodic_dim), jnp.float32),
        # regressor: Linear(hidden, 1)  (stored transposed)
        "w_reg": jax.random.normal(k5, (hidden_dim, 1), jnp.float32) * 0.5,
        "b_reg": jax.random.normal(k6, (1,), jnp.float32) * 0.1,
    }


if __name__ == "__main__":
    key = jax.random.PRNGKey(0)
    kx, kp = jax.random.split(key)

    # Mirror the module's data path: x = randn(1000, 5) * 200, then concat a
    # column of ones -> input_dim = 10; hidden=16, periodic=4.
    batch, input_dim_init, hidden_dim, periodic_dim = 1000, 5, 16, 4
    x_raw = jax.random.normal(kx, (batch, input_dim_init), jnp.float32) * 200.0
    x = jnp.concatenate([x_raw, jnp.ones_like(x_raw)], axis=1)      # (1000, 10)
    input_dim = x.shape[1]

    params = init_params(kp, input_dim, hidden_dim, periodic_dim)
    ref = simple_periodic_fc_ref(x, params)

    # Auto tiling: 1 tile on v5e/v6e, 2 balanced tiles on v7x.
    fwd_auto = jax.jit(simple_periodic_fc)
    out = jax.block_until_ready(fwd_auto(x, params))
    assert out.shape == (batch, 1), out.shape
    err = jnp.max(jnp.abs(out - ref))
    assert jnp.allclose(out, ref, atol=2e-2, rtol=2e-3), f"max abs err = {err}"

    # Also exercise the multi-tile pipelined grid path (4 batch tiles).
    fwd_tiled = jax.jit(functools.partial(simple_periodic_fc, tile_b=256))
    out2 = jax.block_until_ready(fwd_tiled(x, params))
    err2 = jnp.max(jnp.abs(out2 - ref))
    assert jnp.allclose(out2, ref, atol=2e-2, rtol=2e-3), f"max abs err = {err2}"

    print("KERNEL_OK")
</pallas_src>

<mosaic_0001>
module attributes {stable_mosaic.version = 11 : i64} {
  func.func @_fused_kernel(%arg0: i32, %arg1: memref<16x1024xf32, #tpu.memory_space<vmem>>, %arg2: memref<24x16xf32, #tpu.memory_space<vmem>>, %arg3: memref<1x16xf32, #tpu.memory_space<vmem>>, %arg4: memref<1x8xf32, #tpu.memory_space<vmem>>, %arg5: memref<1x1024xf32, #tpu.memory_space<vmem>>) attributes {dimension_semantics = [#tpu.dimension_semantics<parallel>], iteration_bounds = array<i64: 1>, scalar_prefetch = 0 : i64, scratch_operands = 0 : i64, tpu.core_type = #tpu.core_type<tc>, window_params = [{transform_indices = @transform_0, window_bounds = array<i64: 16, 1024>}, {pipeline_mode = #tpu.pipeline_mode<synchronous>, transform_indices = @transform_1, window_bounds = array<i64: 24, 16>}, {pipeline_mode = #tpu.pipeline_mode<synchronous>, transform_indices = @transform_2, window_bounds = array<i64: 1, 16>}, {pipeline_mode = #tpu.pipeline_mode<synchronous>, transform_indices = @transform_3, window_bounds = array<i64: 1, 8>}, {transform_indices = @transform_4, window_bounds = array<i64: 1, 1024>}]} {
    %c0 = arith.constant 0 : index
    %c0_0 = arith.constant 0 : index
    %0 = vector.load %arg1[%c0, %c0_0] : memref<16x1024xf32, #tpu.memory_space<vmem>>, vector<16x1024xf32>
    %c0_1 = arith.constant 0 : index
    %c0_2 = arith.constant 0 : index
    %1 = vector.load %arg2[%c0_1, %c0_2] : memref<24x16xf32, #tpu.memory_space<vmem>>, vector<24x16xf32>
    %cst = arith.constant dense<0.000000e+00> : vector<24x1024xf32>
    %2 = tpu.matmul %1, %0, %cst {dimension_numbers = #tpu.dot_dimension_numbers<[1], [0], [0], [1], [0, 0, 1, 1], [], []>} : vector<24x16xf32>, vector<16x1024xf32>, vector<24x1024xf32> -> vector<24x1024xf32>
    %3 = vector.extract_strided_slice %2 {offsets = [0, 0], sizes = [16, 1024], strides = [1, 1]} : vector<24x1024xf32> to vector<16x1024xf32>
    %cst_3 = arith.constant 0.000000e+00 : f32
    %4 = vector.broadcast %cst_3 : f32 to vector<16x1024xf32>
    %5 = arith.maximumf %3, %4 : vector<16x1024xf32>
    %6 = vector.extract_strided_slice %2 {offsets = [16, 0], sizes = [8, 1024], strides = [1, 1]} : vector<24x1024xf32> to vector<8x1024xf32>
    %7 = math.sin %6 : vector<8x1024xf32>
    %cst_4 = arith.constant 0.000000e+00 : f32
    %8 = vector.broadcast %cst_4 : f32 to vector<8x1024xf32>
    %9 = arith.maximumf %7, %8 : vector<8x1024xf32>
    %c0_5 = arith.constant 0 : index
    %c0_6 = arith.constant 0 : index
    %10 = vector.load %arg3[%c0_5, %c0_6] : memref<1x16xf32, #tpu.memory_space<vmem>>, vector<1x16xf32>
    %cst_7 = arith.constant dense<0.000000e+00> : vector<1x1024xf32>
    %11 = tpu.matmul %10, %5, %cst_7 {dimension_numbers = #tpu.dot_dimension_numbers<[1], [0], [0], [1], [0, 0, 1, 1], [], []>} : vector<1x16xf32>, vector<16x1024xf32>, vector<1x1024xf32> -> vector<1x1024xf32>
    %c0_8 = arith.constant 0 : index
    %c0_9 = arith.constant 0 : index
    %12 = vector.load %arg4[%c0_8, %c0_9] : memref<1x8xf32, #tpu.memory_space<vmem>>, vector<1x8xf32>
    %cst_10 = arith.constant dense<0.000000e+00> : vector<1x1024xf32>
    %13 = tpu.matmul %12, %9, %cst_10 {dimension_numbers = #tpu.dot_dimension_numbers<[1], [0], [0], [1], [0, 0, 1, 1], [], []>} : vector<1x8xf32>, vector<8x1024xf32>, vector<1x1024xf32> -> vector<1x1024xf32>
    %14 = arith.addf %11, %13 : vector<1x1024xf32>
    %c0_11 = arith.constant 0 : index
    %c0_12 = arith.constant 0 : index
    %15 = vector.load %arg5[%c0_11, %c0_12] : memref<1x1024xf32, #tpu.memory_space<vmem>>, vector<1x1024xf32>
    tpu.vector_store %arg5[%c0_11, %c0_12], %14 {strides = array<i32>} : memref<1x1024xf32, #tpu.memory_space<vmem>>, vector<1x1024xf32>,
    return
  }
  func.func @transform_0(%arg0: i32) -> (i32, i32) {
    %c0_i32 = arith.constant 0 : i32
    %c0_i32_0 = arith.constant 0 : i32
    return %c0_i32, %arg0 : i32, i32
  }
  func.func @transform_1(%arg0: i32) -> (i32, i32) {
    %c0_i32 = arith.constant 0 : i32
    %c0_i32_0 = arith.constant 0 : i32
    %c0_i32_1 = arith.constant 0 : i32
    return %c0_i32, %c0_i32_0 : i32, i32
  }
  func.func @transform_2(%arg0: i32) -> (i32, i32) {
    %c0_i32 = arith.constant 0 : i32
    %c0_i32_0 = arith.constant 0 : i32
    %c0_i32_1 = arith.constant 0 : i32
    return %c0_i32, %c0_i32_0 : i32, i32
  }
  func.func @transform_3(%arg0: i32) -> (i32, i32) {
    %c0_i32 = arith.constant 0 : i32
    %c0_i32_0 = arith.constant 0 : i32
    %c0_i32_1 = arith.constant 0 : i32
    return %c0_i32, %c0_i32_0 : i32, i32
  }
  func.func @transform_4(%arg0: i32) -> (i32, i32) {
    %c0_i32 = arith.constant 0 : i32
    %c0_i32_0 = arith.constant 0 : i32
    return %c0_i32, %arg0 : i32, i32
  }
}

</mosaic_0001>

<llo_original>
// kernel: simple_periodic_fc.1
$region0: #{simple_periodic_fc.1}
  #allocation0 [shape = 'u32[]', space=smem, size = 0x4, offset = 0x4, fixed_abs, tag = 'smem constant byte address 0x4 - core index']
  #allocation1 [shape = 'u32[144,128]{1,0:T(1,128)}', space=vmem, size = 0x12000, scoped, tag = 'internal scratch']
  %s0 = inlined_call_operand.vmem [shape: f32[16,1024], index: 0, kind: input, shape index: {}]
  %s1 = inlined_call_operand.vmem [shape: f32[24,16], index: 1, kind: input, shape index: {}]
  %s2 = inlined_call_operand.vmem [shape: f32[1,16], index: 2, kind: input, shape index: {}]
  %s3 = inlined_call_operand.vmem [shape: f32[1,8], index: 3, kind: input, shape index: {}]
  %s4 = inlined_call_operand.vmem [shape: f32[1,1024], index: 4, kind: output, shape index: {}]
  %s5 = sld [smem:[#allocation0]]
  $region26: #{simple_periodic_fc.1} parent=0
    _
  %s7 = ssub.s32 1, %s5
  %s8 = scalar_select 0, %s7, %s5
  // Predicated region
  $region2: #{simple_periodic_fc.1} parent=0 // pred_check
    _
  $region3: #{simple_periodic_fc.1} parent=0 // pred_check_branch
    %10 = sbr.rel (0) target = $region5
  $region4: #{simple_periodic_fc.1} parent=0 // pred_region
    _
  $region5: #{simple_periodic_fc.1} parent=0 // pred_fallthru
    _
  // Predicated region
  $region6: #{simple_periodic_fc.1} parent=0 // pred_check
    _
  $region7: #{simple_periodic_fc.1} parent=0 // pred_check_branch
    %12 = sbr.rel (0) target = $region9
  $region8: #{simple_periodic_fc.1} parent=0 // pred_region
    _
  $region9: #{simple_periodic_fc.1} parent=0 // pred_fallthru
    _
  // Predicated region
  $region10: #{simple_periodic_fc.1} parent=0 // pred_check
    _
  $region11: #{simple_periodic_fc.1} parent=0 // pred_check_branch
    %14 = sbr.rel (0) target = $region13
  $region12: #{simple_periodic_fc.1} parent=0 // pred_region
    _
  $region13: #{simple_periodic_fc.1} parent=0 // pred_fallthru
    _
  // Predicated region
  $region14: #{simple_periodic_fc.1} parent=0 // pred_check
    _
  $region15: #{simple_periodic_fc.1} parent=0 // pred_check_branch
    %16 = sbr.rel (0) target = $region17
  $region16: #{simple_periodic_fc.1} parent=0 // pred_region
    _
  $region17: #{simple_periodic_fc.1} parent=0 // pred_fallthru
    _
  %v17 = vld [vmem:[%s0] sm:$0xff]
  %v18 = vld [vmem:[%s0 + $0x8] sm:$0xff]
  %v19 = vld [vmem:[%s0 + $0x10] sm:$0xff]
  %v20 = vld [vmem:[%s0 + $0x18] sm:$0xff]
  %v21 = vld [vmem:[%s0 + $0x20] sm:$0xff]
  %v22 = vld [vmem:[%s0 + $0x28] sm:$0xff]
  %v23 = vld [vmem:[%s0 + $0x30] sm:$0xff]
  %v24 = vld [vmem:[%s0 + $0x38] sm:$0xff]
  %v25 = vld [vmem:[%s0 + $0x40] sm:$0xff]
  %v26 = vld [vmem:[%s0 + $0x48] sm:$0xff]
  %v27 = vld [vmem:[%s0 + $0x50] sm:$0xff]
  %v28 = vld [vmem:[%s0 + $0x58] sm:$0xff]
  %v29 = vld [vmem:[%s0 + $0x60] sm:$0xff]
  %v30 = vld [vmem:[%s0 + $0x68] sm:$0xff]
  %v31 = vld [vmem:[%s0 + $0x70] sm:$0xff]
  %v32 = vld [vmem:[%s0 + $0x78] sm:$0xff]
  %v33 = vld [vmem:[%s1] sm:$0xff]
  %v34 = vld [vmem:[%s1 + $0x8] sm:$0xff]
  %v35 = vld [vmem:[%s1 + $0x10] sm:$0xff]
  %vm36 = vcmask 130048
  %v38 = vsel %vm36, %v33, 0
  %v41 = vsel %vm36, %v34, 0
  %v44 = vsel %vm36, %v35, 0
  %46 = vmatprep.subr.mxu0 %v18
  %47 = vmatpush1.msra.mxu0 %v17
  %48 = vmatprep.subr.mxu0 %v26
  %49 = vmatpush1.msra.mxu0 %v25
  %50 = vmatprep.subr.mxu0 0.0
  %51 = vmatpush1.msra.mxu0 0.0
  %52 = vmatprep.subr.mxu0 0.0
  %53 = vmatpush1.msra.mxu0 0.0
  %54 = vmatprep.subr.mxu0 0.0
  %55 = vmatpush1.msra.mxu0 0.0
  %56 = vmatprep.subr.mxu0 0.0
  %57 = vmatpush1.msra.mxu0 0.0
  %58 = vmatprep.subr.mxu0 0.0
  %59 = vmatpush1.msra.mxu0 0.0
  %60 = vmatprep.subr.mxu0 0.0
  %61 = vmatpush1.msra.mxu0 0.0
  %62 = vmatprep.subr.mxu0 0.0
  %63 = vmatpush1.msra.mxu0 0.0
  %64 = vmatprep.subr.mxu0 0.0
  %65 = vmatpush1.msra.mxu0 0.0
  %66 = vmatprep.subr.mxu0 0.0
  %67 = vmatpush1.msra.mxu0 0.0
  %68 = vmatprep.subr.mxu0 0.0
  %69 = vmatpush1.msra.mxu0 0.0
  %70 = vmatprep.subr.mxu0 0.0
  %71 = vmatpush1.msra.mxu0 0.0
  %72 = vmatprep.subr.mxu0 0.0
  %73 = vmatpush1.msra.mxu0 0.0
  %74 = vmatprep.subr.mxu0 0.0
  %75 = vmatpush1.msra.mxu0 0.0
  %76 = vmatprep.subr.mxu0 0.0
  %77 = vmatpush1.msra.mxu0 0.0
  %78 = vmatprep.subr.mxu0 0.0
  %79 = vmatpush1.msra.mxu0 0.0
  %80 = vmatprep.subr.mxu0 0.0
  %81 = vmatpush1.msra.mxu0 0.0
  %82 = vmatprep.subr.mxu0 0.0
  %83 = vmatpush1.msra.mxu0 0.0
  %84 = vmatprep.subr.mxu0 0.0
  %85 = vmatpush1.msra.mxu0 0.0
  %86 = vmatprep.subr.mxu0 0.0
  %87 = vmatpush1.msra.mxu0 0.0
  %88 = vmatprep.subr.mxu0 0.0
  %89 = vmatpush1.msra.mxu0 0.0
  %90 = vmatprep.subr.mxu0 0.0
  %91 = vmatpush1.msra.mxu0 0.0
  %92 = vmatprep.subr.mxu0 0.0
  %93 = vmatpush1.msra.mxu0 0.0
  %94 = vmatprep.subr.mxu0 0.0
  %95 = vmatpush1.msra.mxu0 0.0
  %96 = vmatprep.subr.mxu0 0.0
  %97 = vmatpush1.msra.mxu0 0.0
  %98 = vmatprep.subr.mxu0 0.0
  %99 = vmatpush1.msra.mxu0 0.0
  %100 = vmatprep.subr.mxu0 0.0
  %101 = vmatpush1.msra.mxu0 0.0
  %102 = vmatprep.subr.mxu0 0.0
  %103 = vmatpush1.msra.mxu0 0.0
  %104 = vmatprep.subr.mxu0 0.0
  %105 = vmatpush1.msra.mxu0 0.0
  %106 = vmatprep.subr.mxu0 0.0
  %107 = vmatpush1.msra.mxu0 0.0
  %108 = vmatprep.subr.mxu0 0.0
  %109 = vmatpush1.msra.mxu0 0.0
  %110 = vmatprep.mubr.f32.mxu0 0.0
  %111 = vmatmul.mubr.f32.gmra.mrb[0].mxu0 %v38
  %v112 = vpop.f32.mrb[0].mxu0
  %v113 = vadd.f32 0.0, %v112
  %v114 = vpop.f32.mrb[0].mxu0
  %v115 = vadd.f32 0.0, %v114
  %116 = vmatprep.mubr.f32.mxu0 0.0
  %117 = vmatmul.mubr.f32.gmra.mrb[0].mxu0 %v41
  %v118 = vpop.f32.mrb[0].mxu0
  %v119 = vadd.f32 0.0, %v118
  %v120 = vpop.f32.mrb[0].mxu0
  %v121 = vadd.f32 0.0, %v120
  %122 = vmatprep.mubr.f32.mxu0 0.0
  %123 = vmatmul.mubr.f32.gmra.mrb[0].mxu0 %v44
  %v124 = vpop.f32.mrb[0].mxu0
  %v125 = vadd.f32 0.0, %v124
  %v126 = vpop.f32.mrb[0].mxu0
  %v127 = vadd.f32 0.0, %v126
  %128 = vdwg.mxu0
  %129 = vmatprep.subr.mxu0 %v20
  %130 = vmatpush1.msra.mxu0 %v19
  %131 = vmatprep.subr.mxu0 %v28
  %132 = vmatpush1.msra.mxu0 %v27
  %133 = vmatprep.subr.mxu0 0.0
  %134 = vmatpush1.msra.mxu0 0.0
  %135 = vmatprep.subr.mxu0 0.0
  %136 = vmatpush1.msra.mxu0 0.0
  %137 = vmatprep.subr.mxu0 0.0
  %138 = vmatpush1.msra.mxu0 0.0
  %139 = vmatprep.subr.mxu0 0.0
  %140 = vmatpush1.msra.mxu0 0.0
  %141 = vmatprep.subr.mxu0 0.0
  %142 = vmatpush1.msra.mxu0 0.0
  %143 = vmatprep.subr.mxu0 0.0
  %144 = vmatpush1.msra.mxu0 0.0
  %145 = vmatprep.subr.mxu0 0.0
  %146 = vmatpush1.msra.mxu0 0.0
  %147 = vmatprep.subr.mxu0 0.0
  %148 = vmatpush1.msra.mxu0 0.0
  %149 = vmatprep.subr.mxu0 0.0
  %150 = vmatpush1.msra.mxu0 0.0
  %151 = vmatprep.subr.mxu0 0.0
  %152 = vmatpush1.msra.mxu0 0.0
  %153 = vmatprep.subr.mxu0 0.0
  %154 = vmatpush1.msra.mxu0 0.0
  %155 = vmatprep.subr.mxu0 0.0
  %156 = vmatpush1.msra.mxu0 0.0
  %157 = vmatprep.subr.mxu0 0.0
  %158 = vmatpush1.msra.mxu0 0.0
  %159 = vmatprep.subr.mxu0 0.0
  %160 = vmatpush1.msra.mxu0 0.0
  %161 = vmatprep.subr.mxu0 0.0
  %162 = vmatpush1.msra.mxu0 0.0
  %163 = vmatprep.subr.mxu0 0.0
  %164 = vmatpush1.msra.mxu0 0.0
  %165 = vmatprep.subr.mxu0 0.0
  %166 = vmatpush1.msra.mxu0 0.0
  %167 = vmatprep.subr.mxu0 0.0
  %168 = vmatpush1.msra.mxu0 0.0
  %169 = vmatprep.subr.mxu0 0.0
  %170 = vmatpush1.msra.mxu0 0.0
  %171 = vmatprep.subr.mxu0 0.0
  %172 = vmatpush1.msra.mxu0 0.0
  %173 = vmatprep.subr.mxu0 0.0
  %174 = vmatpush1.msra.mxu0 0.0
  %175 = vmatprep.subr.mxu0 0.0
  %176 = vmatpush1.msra.mxu0 0.0
  %177 = vmatprep.subr.mxu0 0.0
  %178 = vmatpush1.msra.mxu0 0.0
  %179 = vmatprep.subr.mxu0 0.0
  %180 = vmatpush1.msra.mxu0 0.0
  %181 = vmatprep.subr.mxu0 0.0
  %182 = vmatpush1.msra.mxu0 0.0
  %183 = vmatprep.subr.mxu0 0.0
  %184 = vmatpush1.msra.mxu0 0.0
  %185 = vmatprep.subr.mxu0 0.0
  %186 = vmatpush1.msra.mxu0 0.0
  %187 = vmatprep.subr.mxu0 0.0
  %188 = vmatpush1.msra.mxu0 0.0
  %189 = vmatprep.subr.mxu0 0.0
  %190 = vmatpush1.msra.mxu0 0.0
  %191 = vmatprep.subr.mxu0 0.0
  %192 = vmatpush1.msra.mxu0 0.0
  %193 = vmatprep.mubr.f32.mxu0 0.0
  %194 = vmatmul.mubr.f32.gmra.mrb[0].mxu0 %v38
  %v195 = vpop.f32.mrb[0].mxu0
  %v196 = vadd.f32 0.0, %v195
  %v197 = vpop.f32.mrb[0].mxu0
  %v198 = vadd.f32 0.0, %v197
  %199 = vmatprep.mubr.f32.mxu0 0.0
  %200 = vmatmul.mubr.f32.gmra.mrb[0].mxu0 %v41
  %v201 = vpop.f32.mrb[0].mxu0
  %v202 = vadd.f32 0.0, %v201
  %v203 = vpop.f32.mrb[0].mxu0
  %v204 = vadd.f32 0.0, %v203
  %205 = vmatprep.mubr.f32.mxu0 0.0
  %206 = vmatmul.mubr.f32.gmra.mrb[0].mxu0 %v44
  %v207 = vpop.f32.mrb[0].mxu0
  %v208 = vadd.f32 0.0, %v207
  %v209 = vpop.f32.mrb[0].mxu0
  %v210 = vadd.f32 0.0, %v209
  %211 = vdwg.mxu0
  %212 = vmatprep.subr.mxu0 %v22
  %213 = vmatpush1.msra.mxu0 %v21
  %214 = vmatprep.subr.mxu0 %v30
  %215 = vmatpush1.msra.mxu0 %v29
  %216 = vmatprep.subr.mxu0 0.0
  %217 = vmatpush1.msra.mxu0 0.0
  %218 = vmatprep.subr.mxu0 0.0
  %219 = vmatpush1.msra.mxu0 0.0
  %220 = vmatprep.subr.mxu0 0.0
  %221 = vmatpush1.msra.mxu0 0.0
  %222 = vmatprep.subr.mxu0 0.0
  %223 = vmatpush1.msra.mxu0 0.0
  %224 = vmatprep.subr.mxu0 0.0
  %225 = vmatpush1.msra.mxu0 0.0
  %226 = vmatprep.subr.mxu0 0.0
  %227 = vmatpush1.msra.mxu0 0.0
  %228 = vmatprep.subr.mxu0 0.0
  %229 = vmatpush1.msra.mxu0 0.0
  %230 = vmatprep.subr.mxu0 0.0
  %231 = vmatpush1.msra.mxu0 0.0
  %232 = vmatprep.subr.mxu0 0.0
  %233 = vmatpush1.msra.mxu0 0.0
  %234 = vmatprep.subr.mxu0 0.0
  %235 = vmatpush1.msra.mxu0 0.0
  %236 = vmatprep.subr.mxu0 0.0
  %237 = vmatpush1.msra.mxu0 0.0
  %238 = vmatprep.subr.mxu0 0.0
  %239 = vmatpush1.msra.mxu0 0.0
  %240 = vmatprep.subr.mxu0 0.0
  %241 = vmatpush1.msra.mxu0 0.0
  %242 = vmatprep.subr.mxu0 0.0
  %243 = vmatpush1.msra.mxu0 0.0
  %244 = vmatprep.subr.mxu0 0.0
  %245 = vmatpush1.msra.mxu0 0.0
  %246 = vmatprep.subr.mxu0 0.0
  %247 = vmatpush1.msra.mxu0 0.0
  %248 = vmatprep.subr.mxu0 0.0
  %249 = vmatpush1.msra.mxu0 0.0
  %250 = vmatprep.subr.mxu0 0.0
  %251 = vmatpush1.msra.mxu0 0.0
  %252 = vmatprep.subr.mxu0 0.0
  %253 = vmatpush1.msra.mxu0 0.0
  %254 = vmatprep.subr.mxu0 0.0
  %255 = vmatpush1.msra.mxu0 0.0
  %256 = vmatprep.subr.mxu0 0.0
  %257 = vmatpush1.msra.mxu0 0.0
  %258 = vmatprep.subr.mxu0 0.0
  %259 = vmatpush1.msra.mxu0 0.0
  %260 = vmatprep.subr.mxu0 0.0
  %261 = vmatpush1.msra.mxu0 0.0
  %262 = vmatprep.subr.mxu0 0.0
  %263 = vmatpush1.msra.mxu0 0.0
  %264 = vmatprep.subr.mxu0 0.0
  %265 = vmatpush1.msra.mxu0 0.0
  %266 = vmatprep.subr.mxu0 0.0
  %267 = vmatpush1.msra.mxu0 0.0
  %268 = vmatprep.subr.mxu0 0.0
  %269 = vmatpush1.msra.mxu0 0.0
  %270 = vmatprep.subr.mxu0 0.0
  %271 = vmatpush1.msra.mxu0 0.0
  %272 = vmatprep.subr.mxu0 0.0
  %273 = vmatpush1.msra.mxu0 0.0
  %274 = vmatprep.subr.mxu0 0.0
  %275 = vmatpush1.msra.mxu0 0.0
  %276 = vmatprep.mubr.f32.mxu0 0.0
  %277 = vmatmul.mubr.f32.gmra.mrb[0].mxu0 %v38
  %v278 = vpop.f32.mrb[0].mxu0
  %v279 = vadd.f32 0.0, %v278
  %v280 = vpop.f32.mrb[0].mxu0
  %v281 = vadd.f32 0.0, %v280
  %282 = vmatprep.mubr.f32.mxu0 0.0
  %283 = vmatmul.mubr.f32.gmra.mrb[0].mxu0 %v41
  %v284 = vpop.f32.mrb[0].mxu0
  %v285 = vadd.f32 0.0, %v284
  %v286 = vpop.f32.mrb[0].mxu0
  %v287 = vadd.f32 0.0, %v286
  %288 = vmatprep.mubr.f32.mxu0 0.0
  %289 = vmatmul.mubr.f32.gmra.mrb[0].mxu0 %v44
  %v290 = vpop.f32.mrb[0].mxu0
  %v291 = vadd.f32 0.0, %v290
  %v292 = vpop.f32.mrb[0].mxu0
  %v293 = vadd.f32 0.0, %v292
  %294 = vdwg.mxu0
  %295 = vmatprep.subr.mxu0 %v24
  %296 = vmatpush1.msra.mxu0 %v23
  %297 = vmatprep.subr.mxu0 %v32
  %298 = vmatpush1.msra.mxu0 %v31
  %299 = vmatprep.subr.mxu0 0.0
  %300 = vmatpush1.msra.mxu0 0.0
  %301 = vmatprep.subr.mxu0 0.0
  %302 = vmatpush1.msra.mxu0 0.0
  %303 = vmatprep.subr.mxu0 0.0
  %304 = vmatpush1.msra.mxu0 0.0
  %305 = vmatprep.subr.mxu0 0.0
  %306 = vmatpush1.msra.mxu0 0.0
  %307 = vmatprep.subr.mxu0 0.0
  %308 = vmatpush1.msra.mxu0 0.0
  %309 = vmatprep.subr.mxu0 0.0
  %310 = vmatpush1.msra.mxu0 0.0
  %311 = vmatprep.subr.mxu0 0.0
  %312 = vmatpush1.msra.mxu0 0.0
  %313 = vmatprep.subr.mxu0 0.0
  %314 = vmatpush1.msra.mxu0 0.0
  %315 = vmatprep.subr.mxu0 0.0
  %316 = vmatpush1.msra.mxu0 0.0
  %317 = vmatprep.subr.mxu0 0.0
  %318 = vmatpush1.msra.mxu0 0.0
  %319 = vmatprep.subr.mxu0 0.0
  %320 = vmatpush1.msra.mxu0 0.0
  %321 = vmatprep.subr.mxu0 0.0
  %322 = vmatpush1.msra.mxu0 0.0
  %323 = vmatprep.subr.mxu0 0.0
  %324 = vmatpush1.msra.mxu0 0.0
  %325 = vmatprep.subr.mxu0 0.0
  %326 = vmatpush1.msra.mxu0 0.0
  %327 = vmatprep.subr.mxu0 0.0
  %328 = vmatpush1.msra.mxu0 0.0
  %329 = vmatprep.subr.mxu0 0.0
  %330 = vmatpush1.msra.mxu0 0.0
  %331 = vmatprep.subr.mxu0 0.0
  %332 = vmatpush1.msra.mxu0 0.0
  %333 = vmatprep.subr.mxu0 0.0
  %334 = vmatpush1.msra.mxu0 0.0
  %335 = vmatprep.subr.mxu0 0.0
  %336 = vmatpush1.msra.mxu0 0.0
  %337 = vmatprep.subr.mxu0 0.0
  %338 = vmatpush1.msra.mxu0 0.0
  %339 = vmatprep.subr.mxu0 0.0
  %340 = vmatpush1.msra.mxu0 0.0
  %341 = vmatprep.subr.mxu0 0.0
  %342 = vmatpush1.msra.mxu0 0.0
  %343 = vmatprep.subr.mxu0 0.0
  %344 = vmatpush1.msra.mxu0 0.0
  %345 = vmatprep.subr.mxu0 0.0
  %346 = vmatpush1.msra.mxu0 0.0
  %347 = vmatprep.subr.mxu0 0.0
  %348 = vmatpush1.msra.mxu0 0.0
  %349 = vmatprep.subr.mxu0 0.0
  %350 = vmatpush1.msra.mxu0 0.0
  %351 = vmatprep.subr.mxu0 0.0
  %352 = vmatpush1.msra.mxu0 0.0
  %353 = vmatprep.subr.mxu0 0.0
  %354 = vmatpush1.msra.mxu0 0.0
  %355 = vmatprep.subr.mxu0 0.0
  %356 = vmatpush1.msra.mxu0 0.0
  %357 = vmatprep.subr.mxu0 0.0
  %358 = vmatpush1.msra.mxu0 0.0
  %359 = vmatprep.mubr.f32.mxu0 0.0
  %360 = vmatmul.mubr.f32.gmra.mrb[0].mxu0 %v38
  %v361 = vpop.f32.mrb[0].mxu0
  %v362 = vadd.f32 0.0, %v361
  %v363 = vpop.f32.mrb[0].mxu0
  %v364 = vadd.f32 0.0, %v363
  %365 = vmatprep.mubr.f32.mxu0 0.0
  %366 = vmatmul.mubr.f32.gmra.mrb[0].mxu0 %v41
  %v367 = vpop.f32.mrb[0].mxu0
  %v368 = vadd.f32 0.0, %v367
  %v369 = vpop.f32.mrb[0].mxu0
  %v370 = vadd.f32 0.0, %v369
  %371 = vmatprep.mubr.f32.mxu0 0.0
  %372 = vmatmul.mubr.f32.gmra.mrb[0].mxu0 %v44
  %v373 = vpop.f32.mrb[0].mxu0
  %v374 = vadd.f32 0.0, %v373
  %v375 = vpop.f32.mrb[0].mxu0
  %v376 = vadd.f32 0.0, %v375
  %377 = vdwg.mxu0
  %v378 = vmax.f32 %v113, 0.0
  %v379 = vmax.f32 %v115, 0.0
  %v380 = vmax.f32 %v196, 0.0
  %v381 = vmax.f32 %v198, 0.0
  %v382 = vmax.f32 %v279, 0.0
  %v383 = vmax.f32 %v281, 0.0
  %v384 = vmax.f32 %v362, 0.0
  %v385 = vmax.f32 %v364, 0.0
  %v386 = vmax.f32 %v119, 0.0
  %v387 = vmax.f32 %v121, 0.0
  %v388 = vmax.f32 %v202, 0.0
  %v389 = vmax.f32 %v204, 0.0
  %v390 = vmax.f32 %v285, 0.0
  %v391 = vmax.f32 %v287, 0.0
  %v392 = vmax.f32 %v368, 0.0
  %v393 = vmax.f32 %v370, 0.0
  %v394 = vand.u32 2147483647, %v125
  %vm395 = vcmp.le.f32.partialorder %v394, 0.7853982
  %vm396 = vcmp.lt.s32.totalorder %v125, 0
  %v397 = vand.u32 %v125, 2139095040
  %v398 = vshrl.u32 %v397, 23
  %v399 = vsub.s32 %v398, 127
  %v400 = vand.u32 2147483647, %v125
  %v401 = vand.u32 %v400, 8388607
  %v402 = vor.u32 %v401, 8388608
  %v403 = vsub.s32 0, %v402
  %v404 = vadd.s32 %v399, 1
  %vm405 = vcmp.gt.s32.totalorder %v404, 0
  %v406 = vsel %vm405, %v404, 0
  %v407 = vshrl.u32 %v406, 5
  %v408 = vand.u32 %v406, 31
  %v409 = vsub.s32 32, %v408
  %v410 = vshrl.u32 683565275, %v409
  %v411 = vshll.u32 683565275, %v408
  %v412 = vshrl.u32 2475754826, %v409
  %v413 = vor.u32 %v411, %v412
  %v414 = vshll.u32 2475754826, %v408
  %v415 = vshrl.u32 2131351028, %v409
  %v416 = vor.u32 %v414, %v415
  %v417 = vshll.u32 2131351028, %v408
  %v418 = vshrl.u32 2102212464, %v409
  %v419 = vor.u32 %v417, %v418
  %v420 = vshll.u32 2102212464, %v408
  %v421 = vshrl.u32 920167782, %v409
  %v422 = vor.u32 %v420, %v421
  %v423 = vshll.u32 920167782, %v408
  %v424 = vshrl.u32 1326507024, %v409
  %v425 = vor.u32 %v423, %v424
  %vm426 = vcmp.lt.s32.totalorder %v407, 1
  %vm427 = vcmp.lt.s32.totalorder %v407, 2
  %vm428 = vcmp.lt.s32.totalorder %v407, 3
  %vm429 = vcmp.lt.s32.totalorder %v407, 4
  %v430 = vsel %vm426, %v410, %v413
  %v431 = vsel %vm429, %v419, 2102212464
  %v432 = vsel %vm428, %v416, %v431
  %v433 = vsel %vm427, %v430, %v432
  %v434 = vsel %vm426, %v413, %v416
  %v435 = vsel %vm429, %v422, 920167782
  %v436 = vsel %vm428, %v419, %v435
  %v437 = vsel %vm427, %v434, %v436
  %v438 = vsel %vm426, %v416, %v419
  %v439 = vsel %vm429, %v425, 1326507024
  %v440 = vsel %vm428, %v422, %v439
  %v441 = vsel %vm427, %v438, %v440
  %v442 = vshll.u32 %v402, 8
  %v443 = vmul.u32.u64.compose %v442, %v441
  %v444 = vextract.low.u32 %v443
  %v445 = vextract.high.u32 %v443
  %v446 = vmul.u32.u64.compose %v442, %v437
  %v447 = vextract.low.u32 %v446
  %v448 = vextract.high.u32 %v446
  %v449 = vmul.u32 %v442, %v433
  %v450 = vadd.s32 %v445, %v447
  %vm451 = vc.u32 %v445, %v447
  %v452 = vadd.s32 %v448, 1
  %v453 = vsel %vm451, %v452, %v448
  %v454 = vadd.s32 %v449, %v453
  %v455 = vadd.s32 %v454, 536870912
  %v456 = vshrl.u32 %v455, 30
  %v457 = vshll.u32 %v456, 30
  %v458 = vsub.s32 %v454, %v457
  %vm459 = vcmp.lt.s32.totalorder %v458, 0
  %v460 = vsub.s32 0, %v458
  %v461 = vsel %vm459, %v460, %v458
  %v462 = vclz %v461
  %v463 = vsub.s32 %v462, 2
  %vm464 = vcmp.gt.s32.totalorder 0, %v463
  %v465 = vsel %vm464, 0, %v463
  %v466 = vsub.s32 32, %v465
  %v467 = vshll.u32 %v458, %v465
  %v468 = vshrl.u32 %v450, %v466
  %v469 = vor.u32 %v467, %v468
  %v470 = vsub.s32 4294967266, %v465
  %v471 = vadd.s32 %v470, 127
  %v472 = vshll.u32 %v471, 23
  %v473 = vor.u32 4788187, %v472
  %v474 = vand.u32 2147483647, %v473
  %v476 = vcvt.s32.f32 %v469
  %v477 = vmul.f32 %v476, %v474
  %v478 = vxor.u32 %v477, 2147483648
  %v479 = vsel %vm396, %v478, %v477
  %v480 = vsub.s32 4, %v456
  %v481 = vsel %vm396, %v480, %v456
  %v482 = vsel %vm395, %v125, %v479
  %v483 = vsel %vm395, 0, %v481
  %v484 = vcosq.f32.pop %v482
  %v485 = vsinq.f32.pop %v482
  %vm486 = vweird.f32 %v125
  %v487 = vadd.s32 %v483, 3
  %v488 = vand.u32 %v487, 3
  %vm489 = vcmp.lt.s32.totalorder %v488, 2
  %vm490 = vcmp.eq.s32.totalorder %v488, 0
  %v491 = vxor.u32 %v485, 2147483648
  %v492 = vsel %vm490, %v484, %v491
  %vm493 = vcmp.eq.s32.totalorder %v488, 2
  %v494 = vxor.u32 %v484, 2147483648
  %v495 = vsel %vm493, %v494, %v485
  %v496 = vsel %vm489, %v492, %v495
  %v497 = vsel %vm486, nan, %v496
  %v498 = vand.u32 2147483647, %v127
  %vm499 = vcmp.le.f32.partialorder %v498, 0.7853982
  %vm500 = vcmp.lt.s32.totalorder %v127, 0
  %v501 = vand.u32 %v127, 2139095040
  %v502 = vshrl.u32 %v501, 23
  %v503 = vsub.s32 %v502, 127
  %v504 = vand.u32 2147483647, %v127
  %v505 = vand.u32 %v504, 8388607
  %v506 = vor.u32 %v505, 8388608
  %v507 = vsub.s32 0, %v506
  %v508 = vadd.s32 %v503, 1
  %vm509 = vcmp.gt.s32.totalorder %v508, 0
  %v510 = vsel %vm509, %v508, 0
  %v511 = vshrl.u32 %v510, 5
  %v512 = vand.u32 %v510, 31
  %v513 = vsub.s32 32, %v512
  %v514 = vshrl.u32 683565275, %v513
  %v515 = vshll.u32 683565275, %v512
  %v516 = vshrl.u32 2475754826, %v513
  %v517 = vor.u32 %v515, %v516
  %v518 = vshll.u32 2475754826, %v512
  %v519 = vshrl.u32 2131351028, %v513
  %v520 = vor.u32 %v518, %v519
  %v521 = vshll.u32 2131351028, %v512
  %v522 = vshrl.u32 2102212464, %v513
  %v523 = vor.u32 %v521, %v522
  %v524 = vshll.u32 2102212464, %v512
  %v525 = vshrl.u32 920167782, %v513
  %v526 = vor.u32 %v524, %v525
  %v527 = vshll.u32 920167782, %v512
  %v528 = vshrl.u32 1326507024, %v513
  %v529 = vor.u32 %v527, %v528
  %vm530 = vcmp.lt.s32.totalorder %v511, 1
  %vm531 = vcmp.lt.s32.totalorder %v511, 2
  %vm532 = vcmp.lt.s32.totalorder %v511, 3
  %vm533 = vcmp.lt.s32.totalorder %v511, 4
  %v534 = vsel %vm530, %v514, %v517
  %v535 = vsel %vm533, %v523, 2102212464
  %v536 = vsel %vm532, %v520, %v535
  %v537 = vsel %vm531, %v534, %v536
  %v538 = vsel %vm530, %v517, %v520
  %v539 = vsel %vm533, %v526, 920167782
  %v540 = vsel %vm532, %v523, %v539
  %v541 = vsel %vm531, %v538, %v540
  %v542 = vsel %vm530, %v520, %v523
  %v543 = vsel %vm533, %v529, 1326507024
  %v544 = vsel %vm532, %v526, %v543
  %v545 = vsel %vm531, %v542, %v544
  %v546 = vshll.u32 %v506, 8
  %v547 = vmul.u32.u64.compose %v546, %v545
  %v548 = vextract.low.u32 %v547
  %v549 = vextract.high.u32 %v547
  %v550 = vmul.u32.u64.compose %v546, %v541
  %v551 = vextract.low.u32 %v550
  %v552 = vextract.high.u32 %v550
  %v553 = vmul.u32 %v546, %v537
  %v554 = vadd.s32 %v549, %v551
  %vm555 = vc.u32 %v549, %v551
  %v556 = vadd.s32 %v552, 1
  %v557 = vsel %vm555, %v556, %v552
  %v558 = vadd.s32 %v553, %v557
  %v559 = vadd.s32 %v558, 536870912
  %v560 = vshrl.u32 %v559, 30
  %v561 = vshll.u32 %v560, 30
  %v562 = vsub.s32 %v558, %v561
  %vm563 = vcmp.lt.s32.totalorder %v562, 0
  %v564 = vsub.s32 0, %v562
  %v565 = vsel %vm563, %v564, %v562
  %v566 = vclz %v565
  %v567 = vsub.s32 %v566, 2
  %vm568 = vcmp.gt.s32.totalorder 0, %v567
  %v569 = vsel %vm568, 0, %v567
  %v570 = vsub.s32 32, %v569
  %v571 = vshll.u32 %v562, %v569
  %v572 = vshrl.u32 %v554, %v570
  %v573 = vor.u32 %v571, %v572
  %v574 = vsub.s32 4294967266, %v569
  %v575 = vadd.s32 %v574, 127
  %v576 = vshll.u32 %v575, 23
  %v577 = vor.u32 4788187, %v576
  %v578 = vand.u32 2147483647, %v577
  %v580 = vcvt.s32.f32 %v573
  %v581 = vmul.f32 %v580, %v578
  %v582 = vxor.u32 %v581, 2147483648
  %v583 = vsel %vm500, %v582, %v581
  %v584 = vsub.s32 4, %v560
  %v585 = vsel %vm500, %v584, %v560
  %v586 = vsel %vm499, %v127, %v583
  %v587 = vsel %vm499, 0, %v585
  %v588 = vcosq.f32.pop %v586
  %v589 = vsinq.f32.pop %v586
  %vm590 = vweird.f32 %v127
  %v591 = vadd.s32 %v587, 3
  %v592 = vand.u32 %v591, 3
  %vm593 = vcmp.lt.s32.totalorder %v592, 2
  %vm594 = vcmp.eq.s32.totalorder %v592, 0
  %v595 = vxor.u32 %v589, 2147483648
  %v596 = vsel %vm594, %v588, %v595
  %vm597 = vcmp.eq.s32.totalorder %v592, 2
  %v598 = vxor.u32 %v588, 2147483648
  %v599 = vsel %vm597, %v598, %v589
  %v600 = vsel %vm593, %v596, %v599
  %v601 = vsel %vm590, nan, %v600
  %v602 = vand.u32 2147483647, %v208
  %vm603 = vcmp.le.f32.partialorder %v602, 0.7853982
  %vm604 = vcmp.lt.s32.totalorder %v208, 0
  %v605 = vand.u32 %v208, 2139095040
  %v606 = vshrl.u32 %v605, 23
  %v607 = vsub.s32 %v606, 127
  %v608 = vand.u32 2147483647, %v208
  %v609 = vand.u32 %v608, 8388607
  %v610 = vor.u32 %v609, 8388608
  %v611 = vsub.s32 0, %v610
  %v612 = vadd.s32 %v607, 1
  %vm613 = vcmp.gt.s32.totalorder %v612, 0
  %v614 = vsel %vm613, %v612, 0
  %v615 = vshrl.u32 %v614, 5
  %v616 = vand.u32 %v614, 31
  %v617 = vsub.s32 32, %v616
  %v618 = vshrl.u32 683565275, %v617
  %v619 = vshll.u32 683565275, %v616
  %v620 = vshrl.u32 2475754826, %v617
  %v621 = vor.u32 %v619, %v620
  %v622 = vshll.u32 2475754826, %v616
  %v623 = vshrl.u32 2131351028, %v617
  %v624 = vor.u32 %v622, %v623
  %v625 = vshll.u32 2131351028, %v616
  %v626 = vshrl.u32 2102212464, %v617
  %v627 = vor.u32 %v625, %v626
  %v628 = vshll.u32 2102212464, %v616
  %v629 = vshrl.u32 920167782, %v617
  %v630 = vor.u32 %v628, %v629
  %v631 = vshll.u32 920167782, %v616
  %v632 = vshrl.u32 1326507024, %v617
  %v633 = vor.u32 %v631, %v632
  %vm634 = vcmp.lt.s32.totalorder %v615, 1
  %vm635 = vcmp.lt.s32.totalorder %v615, 2
  %vm636 = vcmp.lt.s32.totalorder %v615, 3
  %vm637 = vcmp.lt.s32.totalorder %v615, 4
  %v638 = vsel %vm634, %v618, %v621
  %v639 = vsel %vm637, %v627, 2102212464
  %v640 = vsel %vm636, %v624, %v639
  %v641 = vsel %vm635, %v638, %v640
  %v642 = vsel %vm634, %v621, %v624
  %v643 = vsel %vm637, %v630, 920167782
  %v644 = vsel %vm636, %v627, %v643
  %v645 = vsel %vm635, %v642, %v644
  %v646 = vsel %vm634, %v624, %v627
  %v647 = vsel %vm637, %v633, 1326507024
  %v648 = vsel %vm636, %v630, %v647
  %v649 = vsel %vm635, %v646, %v648
  %v650 = vshll.u32 %v610, 8
  %v651 = vmul.u32.u64.compose %v650, %v649
  %v652 = vextract.low.u32 %v651
  %v653 = vextract.high.u32 %v651
  %v654 = vmul.u32.u64.compose %v650, %v645
  %v655 = vextract.low.u32 %v654
  %v656 = vextract.high.u32 %v654
  %v657 = vmul.u32 %v650, %v641
  %v658 = vadd.s32 %v653, %v655
  %vm659 = vc.u32 %v653, %v655
  %v660 = vadd.s32 %v656, 1
  %v661 = vsel %vm659, %v660, %v656
  %v662 = vadd.s32 %v657, %v661
  %v663 = vadd.s32 %v662, 536870912
  %v664 = vshrl.u32 %v663, 30
  %v665 = vshll.u32 %v664, 30
  %v666 = vsub.s32 %v662, %v665
  %vm667 = vcmp.lt.s32.totalorder %v666, 0
  %v668 = vsub.s32 0, %v666
  %v669 = vsel %vm667, %v668, %v666
  %v670 = vclz %v669
  %v671 = vsub.s32 %v670, 2
  %vm672 = vcmp.gt.s32.totalorder 0, %v671
  %v673 = vsel %vm672, 0, %v671
  %v674 = vsub.s32 32, %v673
  %v675 = vshll.u32 %v666, %v673
  %v676 = vshrl.u32 %v658, %v674
  %v677 = vor.u32 %v675, %v676
  %v678 = vsub.s32 4294967266, %v673
  %v679 = vadd.s32 %v678, 127
  %v680 = vshll.u32 %v679, 23
  %v681 = vor.u32 4788187, %v680
  %v682 = vand.u32 2147483647, %v681
  %v684 = vcvt.s32.f32 %v677
  %v685 = vmul.f32 %v684, %v682
  %v686 = vxor.u32 %v685, 2147483648
  %v687 = vsel %vm604, %v686, %v685
  %v688 = vsub.s32 4, %v664
  %v689 = vsel %vm604, %v688, %v664
  %v690 = vsel %vm603, %v208, %v687
  %v691 = vsel %vm603, 0, %v689
  %v692 = vcosq.f32.pop %v690
  %v693 = vsinq.f32.pop %v690
  %vm694 = vweird.f32 %v208
  %v695 = vadd.s32 %v691, 3
  %v696 = vand.u32 %v695, 3
  %vm697 = vcmp.lt.s32.totalorder %v696, 2
  %vm698 = vcmp.eq.s32.totalorder %v696, 0
  %v699 = vxor.u32 %v693, 2147483648
  %v700 = vsel %vm698, %v692, %v699
  %vm701 = vcmp.eq.s32.totalorder %v696, 2
  %v702 = vxor.u32 %v692, 2147483648
  %v703 = vsel %vm701, %v702, %v693
  %v704 = vsel %vm697, %v700, %v703
  %v705 = vsel %vm694, nan, %v704
  %v706 = vand.u32 2147483647, %v210
  %vm707 = vcmp.le.f32.partialorder %v706, 0.7853982
  %vm708 = vcmp.lt.s32.totalorder %v210, 0
  %v709 = vand.u32 %v210, 2139095040
  %v710 = vshrl.u32 %v709, 23
  %v711 = vsub.s32 %v710, 127
  %v712 = vand.u32 2147483647, %v210
  %v713 = vand.u32 %v712, 8388607
  %v714 = vor.u32 %v713, 8388608
  %v715 = vsub.s32 0, %v714
  %v716 = vadd.s32 %v711, 1
  %vm717 = vcmp.gt.s32.totalorder %v716, 0
  %v718 = vsel %vm717, %v716, 0
  %v719 = vshrl.u32 %v718, 5
  %v720 = vand.u32 %v718, 31
  %v721 = vsub.s32 32, %v720
  %v722 = vshrl.u32 683565275, %v721
  %v723 = vshll.u32 683565275, %v720
  %v724 = vshrl.u32 2475754826, %v721
  %v725 = vor.u32 %v723, %v724
  %v726 = vshll.u32 2475754826, %v720
  %v727 = vshrl.u32 2131351028, %v721
  %v728 = vor.u32 %v726, %v727
  %v729 = vshll.u32 2131351028, %v720
  %v730 = vshrl.u32 2102212464, %v721
  %v731 = vor.u32 %v729, %v730
  %v732 = vshll.u32 2102212464, %v720
  %v733 = vshrl.u32 920167782, %v721
  %v734 = vor.u32 %v732, %v733
  %v735 = vshll.u32 920167782, %v720
  %v736 = vshrl.u32 1326507024, %v721
  %v737 = vor.u32 %v735, %v736
  %vm738 = vcmp.lt.s32.totalorder %v719, 1
  %vm739 = vcmp.lt.s32.totalorder %v719, 2
  %vm740 = vcmp.lt.s32.totalorder %v719, 3
  %vm741 = vcmp.lt.s32.totalorder %v719, 4
  %v742 = vsel %vm738, %v722, %v725
  %v743 = vsel %vm741, %v731, 2102212464
  %v744 = vsel %vm740, %v728, %v743
  %v745 = vsel %vm739, %v742, %v744
  %v746 = vsel %vm738, %v725, %v728
  %v747 = vsel %vm741, %v734, 920167782
  %v748 = vsel %vm740, %v731, %v747
  %v749 = vsel %vm739, %v746, %v748
  %v750 = vsel %vm738, %v728, %v731
  %v751 = vsel %vm741, %v737, 1326507024
  %v752 = vsel %vm740, %v734, %v751
  %v753 = vsel %vm739, %v750, %v752
  %v754 = vshll.u32 %v714, 8
  %v755 = vmul.u32.u64.compose %v754, %v753
  %v756 = vextract.low.u32 %v755
  %v757 = vextract.high.u32 %v755
  %v758 = vmul.u32.u64.compose %v754, %v749
  %v759 = vextract.low.u32 %v758
  %v760 = vextract.high.u32 %v758
  %v761 = vmul.u32 %v754, %v745
  %v762 = vadd.s32 %v757, %v759
  %vm763 = vc.u32 %v757, %v759
  %v764 = vadd.s32 %v760, 1
  %v765 = vsel %vm763, %v764, %v760
  %v766 = vadd.s32 %v761, %v765
  %v767 = vadd.s32 %v766, 536870912
  %v768 = vshrl.u32 %v767, 30
  %v769 = vshll.u32 %v768, 30
  %v770 = vsub.s32 %v766, %v769
  %vm771 = vcmp.lt.s32.totalorder %v770, 0
  %v772 = vsub.s32 0, %v770
  %v773 = vsel %vm771, %v772, %v770
  %v774 = vclz %v773
  %v775 = vsub.s32 %v774, 2
  %vm776 = vcmp.gt.s32.totalorder 0, %v775
  %v777 = vsel %vm776, 0, %v775
  %v778 = vsub.s32 32, %v777
  %v779 = vshll.u32 %v770, %v777
  %v780 = vshrl.u32 %v762, %v778
  %v781 = vor.u32 %v779, %v780
  %v782 = vsub.s32 4294967266, %v777
  %v783 = vadd.s32 %v782, 127
  %v784 = vshll.u32 %v783, 23
  %v785 = vor.u32 4788187, %v784
  %v786 = vand.u32 2147483647, %v785
  %v788 = vcvt.s32.f32 %v781
  %v789 = vmul.f32 %v788, %v786
  %v790 = vxor.u32 %v789, 2147483648
  %v791 = vsel %vm708, %v790, %v789
  %v792 = vsub.s32 4, %v768
  %v793 = vsel %vm708, %v792, %v768
  %v794 = vsel %vm707, %v210, %v791
  %v795 = vsel %vm707, 0, %v793
  %v796 = vcosq.f32.pop %v794
  %v797 = vsinq.f32.pop %v794
  %vm798 = vweird.f32 %v210
  %v799 = vadd.s32 %v795, 3
  %v800 = vand.u32 %v799, 3
  %vm801 = vcmp.lt.s32.totalorder %v800, 2
  %vm802 = vcmp.eq.s32.totalorder %v800, 0
  %v803 = vxor.u32 %v797, 2147483648
  %v804 = vsel %vm802, %v796, %v803
  %vm805 = vcmp.eq.s32.totalorder %v800, 2
  %v806 = vxor.u32 %v796, 2147483648
  %v807 = vsel %vm805, %v806, %v797
  %v808 = vsel %vm801, %v804, %v807
  %v809 = vsel %vm798, nan, %v808
  %v810 = vand.u32 2147483647, %v291
  %vm811 = vcmp.le.f32.partialorder %v810, 0.7853982
  %vm812 = vcmp.lt.s32.totalorder %v291, 0
  %v813 = vand.u32 %v291, 2139095040
  %v814 = vshrl.u32 %v813, 23
  %v815 = vsub.s32 %v814, 127
  %v816 = vand.u32 2147483647, %v291
  %v817 = vand.u32 %v816, 8388607
  %v818 = vor.u32 %v817, 8388608
  %v819 = vsub.s32 0, %v818
  %v820 = vadd.s32 %v815, 1
  %vm821 = vcmp.gt.s32.totalorder %v820, 0
  %v822 = vsel %vm821, %v820, 0
  %v823 = vshrl.u32 %v822, 5
  %v824 = vand.u32 %v822, 31
  %v825 = vsub.s32 32, %v824
  %v826 = vshrl.u32 683565275, %v825
  %v827 = vshll.u32 683565275, %v824
  %v828 = vshrl.u32 2475754826, %v825
  %v829 = vor.u32 %v827, %v828
  %v830 = vshll.u32 2475754826, %v824
  %v831 = vshrl.u32 2131351028, %v825
  %v832 = vor.u32 %v830, %v831
  %v833 = vshll.u32 2131351028, %v824
  %v834 = vshrl.u32 2102212464, %v825
  %v835 = vor.u32 %v833, %v834
  %v836 = vshll.u32 2102212464, %v824
  %v837 = vshrl.u32 920167782, %v825
  %v838 = vor.u32 %v836, %v837
  %v839 = vshll.u32 920167782, %v824
  %v840 = vshrl.u32 1326507024, %v825
  %v841 = vor.u32 %v839, %v840
  %vm842 = vcmp.lt.s32.totalorder %v823, 1
  %vm843 = vcmp.lt.s32.totalorder %v823, 2
  %vm844 = vcmp.lt.s32.totalorder %v823, 3
  %vm845 = vcmp.lt.s32.totalorder %v823, 4
  %v846 = vsel %vm842, %v826, %v829
  %v847 = vsel %vm845, %v835, 2102212464
  %v848 = vsel %vm844, %v832, %v847
  %v849 = vsel %vm843, %v846, %v848
  %v850 = vsel %vm842, %v829, %v832
  %v851 = vsel %vm845, %v838, 920167782
  %v852 = vsel %vm844, %v835, %v851
  %v853 = vsel %vm843, %v850, %v852
  %v854 = vsel %vm842, %v832, %v835
  %v855 = vsel %vm845, %v841, 1326507024
  %v856 = vsel %vm844, %v838, %v855
  %v857 = vsel %vm843, %v854, %v856
  %v858 = vshll.u32 %v818, 8
  %v859 = vmul.u32.u64.compose %v858, %v857
  %v860 = vextract.low.u32 %v859
  %v861 = vextract.high.u32 %v859
  %v862 = vmul.u32.u64.compose %v858, %v853
  %v863 = vextract.low.u32 %v862
  %v864 = vextract.high.u32 %v862
  %v865 = vmul.u32 %v858, %v849
  %v866 = vadd.s32 %v861, %v863
  %vm867 = vc.u32 %v861, %v863
  %v868 = vadd.s32 %v864, 1
  %v869 = vsel %vm867, %v868, %v864
  %v870 = vadd.s32 %v865, %v869
  %v871 = vadd.s32 %v870, 536870912
  %v872 = vshrl.u32 %v871, 30
  %v873 = vshll.u32 %v872, 30
  %v874 = vsub.s32 %v870, %v873
  %vm875 = vcmp.lt.s32.totalorder %v874, 0
  %v876 = vsub.s32 0, %v874
  %v877 = vsel %vm875, %v876, %v874
  %v878 = vclz %v877
  %v879 = vsub.s32 %v878, 2
  %vm880 = vcmp.gt.s32.totalorder 0, %v879
  %v881 = vsel %vm880, 0, %v879
  %v882 = vsub.s32 32, %v881
  %v883 = vshll.u32 %v874, %v881
  %v884 = vshrl.u32 %v866, %v882
  %v885 = vor.u32 %v883, %v884
  %v886 = vsub.s32 4294967266, %v881
  %v887 = vadd.s32 %v886, 127
  %v888 = vshll.u32 %v887, 23
  %v889 = vor.u32 4788187, %v888
  %v890 = vand.u32 2147483647, %v889
  %v892 = vcvt.s32.f32 %v885
  %v893 = vmul.f32 %v892, %v890
  %v894 = vxor.u32 %v893, 2147483648
  %v895 = vsel %vm812, %v894, %v893
  %v896 = vsub.s32 4, %v872
  %v897 = vsel %vm812, %v896, %v872
  %v898 = vsel %vm811, %v291, %v895
  %v899 = vsel %vm811, 0, %v897
  %v900 = vcosq.f32.pop %v898
  %v901 = vsinq.f32.pop %v898
  %vm902 = vweird.f32 %v291
  %v903 = vadd.s32 %v899, 3
  %v904 = vand.u32 %v903, 3
  %vm905 = vcmp.lt.s32.totalorder %v904, 2
  %vm906 = vcmp.eq.s32.totalorder %v904, 0
  %v907 = vxor.u32 %v901, 2147483648
  %v908 = vsel %vm906, %v900, %v907
  %vm909 = vcmp.eq.s32.totalorder %v904, 2
  %v910 = vxor.u32 %v900, 2147483648
  %v911 = vsel %vm909, %v910, %v901
  %v912 = vsel %vm905, %v908, %v911
  %v913 = vsel %vm902, nan, %v912
  %v914 = vand.u32 2147483647, %v293
  %vm915 = vcmp.le.f32.partialorder %v914, 0.7853982
  %vm916 = vcmp.lt.s32.totalorder %v293, 0
  %v917 = vand.u32 %v293, 2139095040
  %v918 = vshrl.u32 %v917, 23
  %v919 = vsub.s32 %v918, 127
  %v920 = vand.u32 2147483647, %v293
  %v921 = vand.u32 %v920, 8388607
  %v922 = vor.u32 %v921, 8388608
  %v923 = vsub.s32 0, %v922
  %v924 = vadd.s32 %v919, 1
  %vm925 = vcmp.gt.s32.totalorder %v924, 0
  %v926 = vsel %vm925, %v924, 0
  %v927 = vshrl.u32 %v926, 5
  %v928 = vand.u32 %v926, 31
  %v929 = vsub.s32 32, %v928
  %v930 = vshrl.u32 683565275, %v929
  %v931 = vshll.u32 683565275, %v928
  %v932 = vshrl.u32 2475754826, %v929
  %v933 = vor.u32 %v931, %v932
  %v934 = vshll.u32 2475754826, %v928
  %v935 = vshrl.u32 2131351028, %v929
  %v936 = vor.u32 %v934, %v935
  %v937 = vshll.u32 2131351028, %v928
  %v938 = vshrl.u32 2102212464, %v929
  %v939 = vor.u32 %v937, %v938
  %v940 = vshll.u32 2102212464, %v928
  %v941 = vshrl.u32 920167782, %v929
  %v942 = vor.u32 %v940, %v941
  %v943 = vshll.u32 920167782, %v928
  %v944 = vshrl.u32 1326507024, %v929
  %v945 = vor.u32 %v943, %v944
  %vm946 = vcmp.lt.s32.totalorder %v927, 1
  %vm947 = vcmp.lt.s32.totalorder %v927, 2
  %vm948 = vcmp.lt.s32.totalorder %v927, 3
  %vm949 = vcmp.lt.s32.totalorder %v927, 4
  %v950 = vsel %vm946, %v930, %v933
  %v951 = vsel %vm949, %v939, 2102212464
  %v952 = vsel %vm948, %v936, %v951
  %v953 = vsel %vm947, %v950, %v952
  %v954 = vsel %vm946, %v933, %v936
  %v955 = vsel %vm949, %v942, 920167782
  %v956 = vsel %vm948, %v939, %v955
  %v957 = vsel %vm947, %v954, %v956
  %v958 = vsel %vm946, %v936, %v939
  %v959 = vsel %vm949, %v945, 1326507024
  %v960 = vsel %vm948, %v942, %v959
  %v961 = vsel %vm947, %v958, %v960
  %v962 = vshll.u32 %v922, 8
  %v963 = vmul.u32.u64.compose %v962, %v961
  %v964 = vextract.low.u32 %v963
  %v965 = vextract.high.u32 %v963
  %v966 = vmul.u32.u64.compose %v962, %v957
  %v967 = vextract.low.u32 %v966
  %v968 = vextract.high.u32 %v966
  %v969 = vmul.u32 %v962, %v953
  %v970 = vadd.s32 %v965, %v967
  %vm971 = vc.u32 %v965, %v967
  %v972 = vadd.s32 %v968, 1
  %v973 = vsel %vm971, %v972, %v968
  %v974 = vadd.s32 %v969, %v973
  %v975 = vadd.s32 %v974, 536870912
  %v976 = vshrl.u32 %v975, 30
  %v977 = vshll.u32 %v976, 30
  %v978 = vsub.s32 %v974, %v977
  %vm979 = vcmp.lt.s32.totalorder %v978, 0
  %v980 = vsub.s32 0, %v978
  %v981 = vsel %vm979, %v980, %v978
  %v982 = vclz %v981
  %v983 = vsub.s32 %v982, 2
  %vm984 = vcmp.gt.s32.totalorder 0, %v983
  %v985 = vsel %vm984, 0, %v983
  %v986 = vsub.s32 32, %v985
  %v987 = vshll.u32 %v978, %v985
  %v988 = vshrl.u32 %v970, %v986
  %v989 = vor.u32 %v987, %v988
  %v990 = vsub.s32 4294967266, %v985
  %v991 = vadd.s32 %v990, 127
  %v992 = vshll.u32 %v991, 23
  %v993 = vor.u32 4788187, %v992
  %v994 = vand.u32 2147483647, %v993
  %v996 = vcvt.s32.f32 %v989
  %v997 = vmul.f32 %v996, %v994
  %v998 = vxor.u32 %v997, 2147483648
  %v999 = vsel %vm916, %v998, %v997
  %v1000 = vsub.s32 4, %v976
  %v1001 = vsel %vm916, %v1000, %v976
  %v1002 = vsel %vm915, %v293, %v999
  %v1003 = vsel %vm915, 0, %v1001
  %v1004 = vcosq.f32.pop %v1002
  %v1005 = vsinq.f32.pop %v1002
  %vm1006 = vweird.f32 %v293
  %v1007 = vadd.s32 %v1003, 3
  %v1008 = vand.u32 %v1007, 3
  %vm1009 = vcmp.lt.s32.totalorder %v1008, 2
  %vm1010 = vcmp.eq.s32.totalorder %v1008, 0
  %v1011 = vxor.u32 %v1005, 2147483648
  %v1012 = vsel %vm1010, %v1004, %v1011
  %vm1013 = vcmp.eq.s32.totalorder %v1008, 2
  %v1014 = vxor.u32 %v1004, 2147483648
  %v1015 = vsel %vm1013, %v1014, %v1005
  %v1016 = vsel %vm1009, %v1012, %v1015
  %v1017 = vsel %vm1006, nan, %v1016
  %v1018 = vand.u32 2147483647, %v374
  %vm1019 = vcmp.le.f32.partialorder %v1018, 0.7853982
  %vm1020 = vcmp.lt.s32.totalorder %v374, 0
  %v1021 = vand.u32 %v374, 2139095040
  %v1022 = vshrl.u32 %v1021, 23
  %v1023 = vsub.s32 %v1022, 127
  %v1024 = vand.u32 2147483647, %v374
  %v1025 = vand.u32 %v1024, 8388607
  %v1026 = vor.u32 %v1025, 8388608
  %v1027 = vsub.s32 0, %v1026
  %v1028 = vadd.s32 %v1023, 1
  %vm1029 = vcmp.gt.s32.totalorder %v1028, 0
  %v1030 = vsel %vm1029, %v1028, 0
  %v1031 = vshrl.u32 %v1030, 5
  %v1032 = vand.u32 %v1030, 31
  %v1033 = vsub.s32 32, %v1032
  %v1034 = vshrl.u32 683565275, %v1033
  %v1035 = vshll.u32 683565275, %v1032
  %v1036 = vshrl.u32 2475754826, %v1033
  %v1037 = vor.u32 %v1035, %v1036
  %v1038 = vshll.u32 2475754826, %v1032
  %v1039 = vshrl.u32 2131351028, %v1033
  %v1040 = vor.u32 %v1038, %v1039
  %v1041 = vshll.u32 2131351028, %v1032
  %v1042 = vshrl.u32 2102212464, %v1033
  %v1043 = vor.u32 %v1041, %v1042
  %v1044 = vshll.u32 2102212464, %v1032
  %v1045 = vshrl.u32 920167782, %v1033
  %v1046 = vor.u32 %v1044, %v1045
  %v1047 = vshll.u32 920167782, %v1032
  %v1048 = vshrl.u32 1326507024, %v1033
  %v1049 = vor.u32 %v1047, %v1048
  %vm1050 = vcmp.lt.s32.totalorder %v1031, 1
  %vm1051 = vcmp.lt.s32.totalorder %v1031, 2
  %vm1052 = vcmp.lt.s32.totalorder %v1031, 3
  %vm1053 = vcmp.lt.s32.totalorder %v1031, 4
  %v1054 = vsel %vm1050, %v1034, %v1037
  %v1055 = vsel %vm1053, %v1043, 2102212464
  %v1056 = vsel %vm1052, %v1040, %v1055
  %v1057 = vsel %vm1051, %v1054, %v1056
  %v1058 = vsel %vm1050, %v1037, %v1040
  %v1059 = vsel %vm1053, %v1046, 920167782
  %v1060 = vsel %vm1052, %v1043, %v1059
  %v1061 = vsel %vm1051, %v1058, %v1060
  %v1062 = vsel %vm1050, %v1040, %v1043
  %v1063 = vsel %vm1053, %v1049, 1326507024
  %v1064 = vsel %vm1052, %v1046, %v1063
  %v1065 = vsel %vm1051, %v1062, %v1064
  %v1066 = vshll.u32 %v1026, 8
  %v1067 = vmul.u32.u64.compose %v1066, %v1065
  %v1068 = vextract.low.u32 %v1067
  %v1069 = vextract.high.u32 %v1067
  %v1070 = vmul.u32.u64.compose %v1066, %v1061
  %v1071 = vextract.low.u32 %v1070
  %v1072 = vextract.high.u32 %v1070
  %v1073 = vmul.u32 %v1066, %v1057
  %v1074 = vadd.s32 %v1069, %v1071
  %vm1075 = vc.u32 %v1069, %v1071
  %v1076 = vadd.s32 %v1072, 1
  %v1077 = vsel %vm1075, %v1076, %v1072
  %v1078 = vadd.s32 %v1073, %v1077
  %v1079 = vadd.s32 %v1078, 536870912
  %v1080 = vshrl.u32 %v1079, 30
  %v1081 = vshll.u32 %v1080, 30
  %v1082 = vsub.s32 %v1078, %v1081
  %vm1083 = vcmp.lt.s32.totalorder %v1082, 0
  %v1084 = vsub.s32 0, %v1082
  %v1085 = vsel %vm1083, %v1084, %v1082
  %v1086 = vclz %v1085
  %v1087 = vsub.s32 %v1086, 2
  %vm1088 = vcmp.gt.s32.totalorder 0, %v1087
  %v1089 = vsel %vm1088, 0, %v1087
  %v1090 = vsub.s32 32, %v1089
  %v1091 = vshll.u32 %v1082, %v1089
  %v1092 = vshrl.u32 %v1074, %v1090
  %v1093 = vor.u32 %v1091, %v1092
  %v1094 = vsub.s32 4294967266, %v1089
  %v1095 = vadd.s32 %v1094, 127
  %v1096 = vshll.u32 %v1095, 23
  %v1097 = vor.u32 4788187, %v1096
  %v1098 = vand.u32 2147483647, %v1097
  %v1100 = vcvt.s32.f32 %v1093
  %v1101 = vmul.f32 %v1100, %v1098
  %v1102 = vxor.u32 %v1101, 2147483648
  %v1103 = vsel %vm1020, %v1102, %v1101
  %v1104 = vsub.s32 4, %v1080
  %v1105 = vsel %vm1020, %v1104, %v1080
  %v1106 = vsel %vm1019, %v374, %v1103
  %v1107 = vsel %vm1019, 0, %v1105
  %v1108 = vcosq.f32.pop %v1106
  %v1109 = vsinq.f32.pop %v1106
  %vm1110 = vweird.f32 %v374
  %v1111 = vadd.s32 %v1107, 3
  %v1112 = vand.u32 %v1111, 3
  %vm1113 = vcmp.lt.s32.totalorder %v1112, 2
  %vm1114 = vcmp.eq.s32.totalorder %v1112, 0
  %v1115 = vxor.u32 %v1109, 2147483648
  %v1116 = vsel %vm1114, %v1108, %v1115
  %vm1117 = vcmp.eq.s32.totalorder %v1112, 2
  %v1118 = vxor.u32 %v1108, 2147483648
  %v1119 = vsel %vm1117, %v1118, %v1109
  %v1120 = vsel %vm1113, %v1116, %v1119
  %v1121 = vsel %vm1110, nan, %v1120
  %v1122 = vand.u32 2147483647, %v376
  %vm1123 = vcmp.le.f32.partialorder %v1122, 0.7853982
  %vm1124 = vcmp.lt.s32.totalorder %v376, 0
  %v1125 = vand.u32 %v376, 2139095040
  %v1126 = vshrl.u32 %v1125, 23
  %v1127 = vsub.s32 %v1126, 127
  %v1128 = vand.u32 2147483647, %v376
  %v1129 = vand.u32 %v1128, 8388607
  %v1130 = vor.u32 %v1129, 8388608
  %v1131 = vsub.s32 0, %v1130
  %v1132 = vadd.s32 %v1127, 1
  %vm1133 = vcmp.gt.s32.totalorder %v1132, 0
  %v1134 = vsel %vm1133, %v1132, 0
  %v1135 = vshrl.u32 %v1134, 5
  %v1136 = vand.u32 %v1134, 31
  %v1137 = vsub.s32 32, %v1136
  %v1138 = vshrl.u32 683565275, %v1137
  %v1139 = vshll.u32 683565275, %v1136
  %v1140 = vshrl.u32 2475754826, %v1137
  %v1141 = vor.u32 %v1139, %v1140
  %v1142 = vshll.u32 2475754826, %v1136
  %v1143 = vshrl.u32 2131351028, %v1137
  %v1144 = vor.u32 %v1142, %v1143
  %v1145 = vshll.u32 2131351028, %v1136
  %v1146 = vshrl.u32 2102212464, %v1137
  %v1147 = vor.u32 %v1145, %v1146
  %v1148 = vshll.u32 2102212464, %v1136
  %v1149 = vshrl.u32 920167782, %v1137
  %v1150 = vor.u32 %v1148, %v1149
  %v1151 = vshll.u32 920167782, %v1136
  %v1152 = vshrl.u32 1326507024, %v1137
  %v1153 = vor.u32 %v1151, %v1152
  %vm1154 = vcmp.lt.s32.totalorder %v1135, 1
  %vm1155 = vcmp.lt.s32.totalorder %v1135, 2
  %vm1156 = vcmp.lt.s32.totalorder %v1135, 3
  %vm1157 = vcmp.lt.s32.totalorder %v1135, 4
  %v1158 = vsel %vm1154, %v1138, %v1141
  %v1159 = vsel %vm1157, %v1147, 2102212464
  %v1160 = vsel %vm1156, %v1144, %v1159
  %v1161 = vsel %vm1155, %v1158, %v1160
  %v1162 = vsel %vm1154, %v1141, %v1144
  %v1163 = vsel %vm1157, %v1150, 920167782
  %v1164 = vsel %vm1156, %v1147, %v1163
  %v1165 = vsel %vm1155, %v1162, %v1164
  %v1166 = vsel %vm1154, %v1144, %v1147
  %v1167 = vsel %vm1157, %v1153, 1326507024
  %v1168 = vsel %vm1156, %v1150, %v1167
  %v1169 = vsel %vm1155, %v1166, %v1168
  %v1170 = vshll.u32 %v1130, 8
  %v1171 = vmul.u32.u64.compose %v1170, %v1169
  %v1172 = vextract.low.u32 %v1171
  %v1173 = vextract.high.u32 %v1171
  %v1174 = vmul.u32.u64.compose %v1170, %v1165
  %v1175 = vextract.low.u32 %v1174
  %v1176 = vextract.high.u32 %v1174
  %v1177 = vmul.u32 %v1170, %v1161
  %v1178 = vadd.s32 %v1173, %v1175
  %vm1179 = vc.u32 %v1173, %v1175
  %v1180 = vadd.s32 %v1176, 1
  %v1181 = vsel %vm1179, %v1180, %v1176
  %v1182 = vadd.s32 %v1177, %v1181
  %v1183 = vadd.s32 %v1182, 536870912
  %v1184 = vshrl.u32 %v1183, 30
  %v1185 = vshll.u32 %v1184, 30
  %v1186 = vsub.s32 %v1182, %v1185
  %vm1187 = vcmp.lt.s32.totalorder %v1186, 0
  %v1188 = vsub.s32 0, %v1186
  %v1189 = vsel %vm1187, %v1188, %v1186
  %v1190 = vclz %v1189
  %v1191 = vsub.s32 %v1190, 2
  %vm1192 = vcmp.gt.s32.totalorder 0, %v1191
  %v1193 = vsel %vm1192, 0, %v1191
  %v1194 = vsub.s32 32, %v1193
  %v1195 = vshll.u32 %v1186, %v1193
  %v1196 = vshrl.u32 %v1178, %v1194
  %v1197 = vor.u32 %v1195, %v1196
  %v1198 = vsub.s32 4294967266, %v1193
  %v1199 = vadd.s32 %v1198, 127
  %v1200 = vshll.u32 %v1199, 23
  %v1201 = vor.u32 4788187, %v1200
  %v1202 = vand.u32 2147483647, %v1201
  %v1204 = vcvt.s32.f32 %v1197
  %v1205 = vmul.f32 %v1204, %v1202
  %v1206 = vxor.u32 %v1205, 2147483648
  %v1207 = vsel %vm1124, %v1206, %v1205
  %v1208 = vsub.s32 4, %v1184
  %v1209 = vsel %vm1124, %v1208, %v1184
  %v1210 = vsel %vm1123, %v376, %v1207
  %v1211 = vsel %vm1123, 0, %v1209
  %v1212 = vcosq.f32.pop %v1210
  %v1213 = vsinq.f32.pop %v1210
  %vm1214 = vweird.f32 %v376
  %v1215 = vadd.s32 %v1211, 3
  %v1216 = vand.u32 %v1215, 3
  %vm1217 = vcmp.lt.s32.totalorder %v1216, 2
  %vm1218 = vcmp.eq.s32.totalorder %v1216, 0
  %v1219 = vxor.u32 %v1213, 2147483648
  %v1220 = vsel %vm1218, %v1212, %v1219
  %vm1221 = vcmp.eq.s32.totalorder %v1216, 2
  %v1222 = vxor.u32 %v1212, 2147483648
  %v1223 = vsel %vm1221, %v1222, %v1213
  %v1224 = vsel %vm1217, %v1220, %v1223
  %v1225 = vsel %vm1214, nan, %v1224
  %v1226 = vmax.f32 %v497, 0.0
  %v1227 = vmax.f32 %v601, 0.0
  %v1228 = vmax.f32 %v705, 0.0
  %v1229 = vmax.f32 %v809, 0.0
  %v1230 = vmax.f32 %v913, 0.0
  %v1231 = vmax.f32 %v1017, 0.0
  %v1232 = vmax.f32 %v1121, 0.0
  %v1233 = vmax.f32 %v1225, 0.0
  %v1234 = vld [vmem:[%s2] sm:$0x1]
  %v1235 = vld [vmem:[%s3] sm:$0x1]
  %vm1236 = vcmask 64512
  %v1238 = vsel %vm1236, %v1235, 0
  %1240 = vmatprep.subr.mxu0 %v1227
  %1241 = vmatpush1.msra.mxu0 %v1226
  %1242 = vmatprep.subr.mxu0 0.0
  %1243 = vmatpush1.msra.mxu0 0.0
  %1244 = vmatprep.subr.mxu0 0.0
  %1245 = vmatpush1.msra.mxu0 0.0
  %1246 = vmatprep.subr.mxu0 0.0
  %1247 = vmatpush1.msra.mxu0 0.0
  %1248 = vmatprep.subr.mxu0 0.0
  %1249 = vmatpush1.msra.mxu0 0.0
  %1250 = vmatprep.subr.mxu0 0.0
  %1251 = vmatpush1.msra.mxu0 0.0
  %1252 = vmatprep.subr.mxu0 0.0
  %1253 = vmatpush1.msra.mxu0 0.0
  %1254 = vmatprep.subr.mxu0 0.0
  %1255 = vmatpush1.msra.mxu0 0.0
  %1256 = vmatprep.subr.mxu0 0.0
  %1257 = vmatpush1.msra.mxu0 0.0
  %1258 = vmatprep.subr.mxu0 0.0
  %1259 = vmatpush1.msra.mxu0 0.0
  %1260 = vmatprep.subr.mxu0 0.0
  %1261 = vmatpush1.msra.mxu0 0.0
  %1262 = vmatprep.subr.mxu0 0.0
  %1263 = vmatpush1.msra.mxu0 0.0
  %1264 = vmatprep.subr.mxu0 0.0
  %1265 = vmatpush1.msra.mxu0 0.0
  %1266 = vmatprep.subr.mxu0 0.0
  %1267 = vmatpush1.msra.mxu0 0.0
  %1268 = vmatprep.subr.mxu0 0.0
  %1269 = vmatpush1.msra.mxu0 0.0
  %1270 = vmatprep.subr.mxu0 0.0
  %1271 = vmatpush1.msra.mxu0 0.0
  %1272 = vmatprep.subr.mxu0 0.0
  %1273 = vmatpush1.msra.mxu0 0.0
  %1274 = vmatprep.subr.mxu0 0.0
  %1275 = vmatpush1.msra.mxu0 0.0
  %1276 = vmatprep.subr.mxu0 0.0
  %1277 = vmatpush1.msra.mxu0 0.0
  %1278 = vmatprep.subr.mxu0 0.0
  %1279 = vmatpush1.msra.mxu0 0.0
  %1280 = vmatprep.subr.mxu0 0.0
  %1281 = vmatpush1.msra.mxu0 0.0
  %1282 = vmatprep.subr.mxu0 0.0
  %1283 = vmatpush1.msra.mxu0 0.0
  %1284 = vmatprep.subr.mxu0 0.0
  %1285 = vmatpush1.msra.mxu0 0.0
  %1286 = vmatprep.subr.mxu0 0.0
  %1287 = vmatpush1.msra.mxu0 0.0
  %1288 = vmatprep.subr.mxu0 0.0
  %1289 = vmatpush1.msra.mxu0 0.0
  %1290 = vmatprep.subr.mxu0 0.0
  %1291 = vmatpush1.msra.mxu0 0.0
  %1292 = vmatprep.subr.mxu0 0.0
  %1293 = vmatpush1.msra.mxu0 0.0
  %1294 = vmatprep.subr.mxu0 0.0
  %1295 = vmatpush1.msra.mxu0 0.0
  %1296 = vmatprep.subr.mxu0 0.0
  %1297 = vmatpush1.msra.mxu0 0.0
  %1298 = vmatprep.subr.mxu0 0.0
  %1299 = vmatpush1.msra.mxu0 0.0
  %1300 = vmatprep.subr.mxu0 0.0
  %1301 = vmatpush1.msra.mxu0 0.0
  %1302 = vmatprep.subr.mxu0 0.0
  %1303 = vmatpush1.msra.mxu0 0.0
  %1304 = vmatprep.mubr.f32.mxu0 0.0
  %1305 = vmatmul.mubr.f32.gmra.mrb[0].mxu0 %v1238
  %v1306 = vpop.f32.mrb[0].mxu0
  %v1307 = vadd.f32 0.0, %v1306
  %v1308 = vpop.f32.mrb[0].mxu0
  %v1309 = vadd.f32 0.0, %v1308
  %1310 = vdwg.mxu0
  %1311 = vmatprep.subr.mxu0 %v1229
  %1312 = vmatpush1.msra.mxu0 %v1228
  %1313 = vmatprep.subr.mxu0 0.0
  %1314 = vmatpush1.msra.mxu0 0.0
  %1315 = vmatprep.subr.mxu0 0.0
  %1316 = vmatpush1.msra.mxu0 0.0
  %1317 = vmatprep.subr.mxu0 0.0
  %1318 = vmatpush1.msra.mxu0 0.0
  %1319 = vmatprep.subr.mxu0 0.0
  %1320 = vmatpush1.msra.mxu0 0.0
  %1321 = vmatprep.subr.mxu0 0.0
  %1322 = vmatpush1.msra.mxu0 0.0
  %1323 = vmatprep.subr.mxu0 0.0
  %1324 = vmatpush1.msra.mxu0 0.0
  %1325 = vmatprep.subr.mxu0 0.0
  %1326 = vmatpush1.msra.mxu0 0.0
  %1327 = vmatprep.subr.mxu0 0.0
  %1328 = vmatpush1.msra.mxu0 0.0
  %1329 = vmatprep.subr.mxu0 0.0
  %1330 = vmatpush1.msra.mxu0 0.0
  %1331 = vmatprep.subr.mxu0 0.0
  %1332 = vmatpush1.msra.mxu0 0.0
  %1333 = vmatprep.subr.mxu0 0.0
  %1334 = vmatpush1.msra.mxu0 0.0
  %1335 = vmatprep.subr.mxu0 0.0
  %1336 = vmatpush1.msra.mxu0 0.0
  %1337 = vmatprep.subr.mxu0 0.0
  %1338 = vmatpush1.msra.mxu0 0.0
  %1339 = vmatprep.subr.mxu0 0.0
  %1340 = vmatpush1.msra.mxu0 0.0
  %1341 = vmatprep.subr.mxu0 0.0
  %1342 = vmatpush1.msra.mxu0 0.0
  %1343 = vmatprep.subr.mxu0 0.0
  %1344 = vmatpush1.msra.mxu0 0.0
  %1345 = vmatprep.subr.mxu0 0.0
  %1346 = vmatpush1.msra.mxu0 0.0
  %1347 = vmatprep.subr.mxu0 0.0
  %1348 = vmatpush1.msra.mxu0 0.0
  %1349 = vmatprep.subr.mxu0 0.0
  %1350 = vmatpush1.msra.mxu0 0.0
  %1351 = vmatprep.subr.mxu0 0.0
  %1352 = vmatpush1.msra.mxu0 0.0
  %1353 = vmatprep.subr.mxu0 0.0
  %1354 = vmatpush1.msra.mxu0 0.0
  %1355 = vmatprep.subr.mxu0 0.0
  %1356 = vmatpush1.msra.mxu0 0.0
  %1357 = vmatprep.subr.mxu0 0.0
  %1358 = vmatpush1.msra.mxu0 0.0
  %1359 = vmatprep.subr.mxu0 0.0
  %1360 = vmatpush1.msra.mxu0 0.0
  %1361 = vmatprep.subr.mxu0 0.0
  %1362 = vmatpush1.msra.mxu0 0.0
  %1363 = vmatprep.subr.mxu0 0.0
  %1364 = vmatpush1.msra.mxu0 0.0
  %1365 = vmatprep.subr.mxu0 0.0
  %1366 = vmatpush1.msra.mxu0 0.0
  %1367 = vmatprep.subr.mxu0 0.0
  %1368 = vmatpush1.msra.mxu0 0.0
  %1369 = vmatprep.subr.mxu0 0.0
  %1370 = vmatpush1.msra.mxu0 0.0
  %1371 = vmatprep.subr.mxu0 0.0
  %1372 = vmatpush1.msra.mxu0 0.0
  %1373 = vmatprep.subr.mxu0 0.0
  %1374 = vmatpush1.msra.mxu0 0.0
  %1375 = vmatprep.mubr.f32.mxu0 0.0
  %1376 = vmatmul.mubr.f32.gmra.mrb[0].mxu0 %v1238
  %v1377 = vpop.f32.mrb[0].mxu0
  %v1378 = vadd.f32 0.0, %v1377
  %v1379 = vpop.f32.mrb[0].mxu0
  %v1380 = vadd.f32 0.0, %v1379
  %1381 = vdwg.mxu0
  %1382 = vmatprep.subr.mxu0 %v1231
  %1383 = vmatpush1.msra.mxu0 %v1230
  %1384 = vmatprep.subr.mxu0 0.0
  %1385 = vmatpush1.msra.mxu0 0.0
  %1386 = vmatprep.subr.mxu0 0.0
  %1387 = vmatpush1.msra.mxu0 0.0
  %1388 = vmatprep.subr.mxu0 0.0
  %1389 = vmatpush1.msra.mxu0 0.0
  %1390 = vmatprep.subr.mxu0 0.0
  %1391 = vmatpush1.msra.mxu0 0.0
  %1392 = vmatprep.subr.mxu0 0.0
  %1393 = vmatpush1.msra.mxu0 0.0
  %1394 = vmatprep.subr.mxu0 0.0
  %1395 = vmatpush1.msra.mxu0 0.0
  %1396 = vmatprep.subr.mxu0 0.0
  %1397 = vmatpush1.msra.mxu0 0.0
  %1398 = vmatprep.subr.mxu0 0.0
  %1399 = vmatpush1.msra.mxu0 0.0
  %1400 = vmatprep.subr.mxu0 0.0
  %1401 = vmatpush1.msra.mxu0 0.0
  %1402 = vmatprep.subr.mxu0 0.0
  %1403 = vmatpush1.msra.mxu0 0.0
  %1404 = vmatprep.subr.mxu0 0.0
  %1405 = vmatpush1.msra.mxu0 0.0
  %1406 = vmatprep.subr.mxu0 0.0
  %1407 = vmatpush1.msra.mxu0 0.0
  %1408 = vmatprep.subr.mxu0 0.0
  %1409 = vmatpush1.msra.mxu0 0.0
  %1410 = vmatprep.subr.mxu0 0.0
  %1411 = vmatpush1.msra.mxu0 0.0
  %1412 = vmatprep.subr.mxu0 0.0
  %1413 = vmatpush1.msra.mxu0 0.0
  %1414 = vmatprep.subr.mxu0 0.0
  %1415 = vmatpush1.msra.mxu0 0.0
  %1416 = vmatprep.subr.mxu0 0.0
  %1417 = vmatpush1.msra.mxu0 0.0
  %1418 = vmatprep.subr.mxu0 0.0
  %1419 = vmatpush1.msra.mxu0 0.0
  %1420 = vmatprep.subr.mxu0 0.0
  %1421 = vmatpush1.msra.mxu0 0.0
  %1422 = vmatprep.subr.mxu0 0.0
  %1423 = vmatpush1.msra.mxu0 0.0
  %1424 = vmatprep.subr.mxu0 0.0
  %1425 = vmatpush1.msra.mxu0 0.0
  %1426 = vmatprep.subr.mxu0 0.0
  %1427 = vmatpush1.msra.mxu0 0.0
  %1428 = vmatprep.subr.mxu0 0.0
  %1429 = vmatpush1.msra.mxu0 0.0
  %1430 = vmatprep.subr.mxu0 0.0
  %1431 = vmatpush1.msra.mxu0 0.0
  %1432 = vmatprep.subr.mxu0 0.0
  %1433 = vmatpush1.msra.mxu0 0.0
  %1434 = vmatprep.subr.mxu0 0.0
  %1435 = vmatpush1.msra.mxu0 0.0
  %1436 = vmatprep.subr.mxu0 0.0
  %1437 = vmatpush1.msra.mxu0 0.0
  %1438 = vmatprep.subr.mxu0 0.0
  %1439 = vmatpush1.msra.mxu0 0.0
  %1440 = vmatprep.subr.mxu0 0.0
  %1441 = vmatpush1.msra.mxu0 0.0
  %1442 = vmatprep.subr.mxu0 0.0
  %1443 = vmatpush1.msra.mxu0 0.0
  %1444 = vmatprep.subr.mxu0 0.0
  %1445 = vmatpush1.msra.mxu0 0.0
  %1446 = vmatprep.mubr.f32.mxu0 0.0
  %1447 = vmatmul.mubr.f32.gmra.mrb[0].mxu0 %v1238
  %v1448 = vpop.f32.mrb[0].mxu0
  %v1449 = vadd.f32 0.0, %v1448
  %v1450 = vpop.f32.mrb[0].mxu0
  %v1451 = vadd.f32 0.0, %v1450
  %1452 = vdwg.mxu0
  %1453 = vmatprep.subr.mxu0 %v1233
  %1454 = vmatpush1.msra.mxu0 %v1232
  %1455 = vmatprep.subr.mxu0 0.0
  %1456 = vmatpush1.msra.mxu0 0.0
  %1457 = vmatprep.subr.mxu0 0.0
  %1458 = vmatpush1.msra.mxu0 0.0
  %1459 = vmatprep.subr.mxu0 0.0
  %1460 = vmatpush1.msra.mxu0 0.0
  %1461 = vmatprep.subr.mxu0 0.0
  %1462 = vmatpush1.msra.mxu0 0.0
  %1463 = vmatprep.subr.mxu0 0.0
  %1464 = vmatpush1.msra.mxu0 0.0
  %1465 = vmatprep.subr.mxu0 0.0
  %1466 = vmatpush1.msra.mxu0 0.0
  %1467 = vmatprep.subr.mxu0 0.0
  %1468 = vmatpush1.msra.mxu0 0.0
  %1469 = vmatprep.subr.mxu0 0.0
  %1470 = vmatpush1.msra.mxu0 0.0
  %1471 = vmatprep.subr.mxu0 0.0
  %1472 = vmatpush1.msra.mxu0 0.0
  %1473 = vmatprep.subr.mxu0 0.0
  %1474 = vmatpush1.msra.mxu0 0.0
  %1475 = vmatprep.subr.mxu0 0.0
  %1476 = vmatpush1.msra.mxu0 0.0
  %1477 = vmatprep.subr.mxu0 0.0
  %1478 = vmatpush1.msra.mxu0 0.0
  %1479 = vmatprep.subr.mxu0 0.0
  %1480 = vmatpush1.msra.mxu0 0.0
  %1481 = vmatprep.subr.mxu0 0.0
  %1482 = vmatpush1.msra.mxu0 0.0
  %1483 = vmatprep.subr.mxu0 0.0
  %1484 = vmatpush1.msra.mxu0 0.0
  %1485 = vmatprep.subr.mxu0 0.0
  %1486 = vmatpush1.msra.mxu0 0.0
  %1487 = vmatprep.subr.mxu0 0.0
  %1488 = vmatpush1.msra.mxu0 0.0
  %1489 = vmatprep.subr.mxu0 0.0
  %1490 = vmatpush1.msra.mxu0 0.0
  %1491 = vmatprep.subr.mxu0 0.0
  %1492 = vmatpush1.msra.mxu0 0.0
  %1493 = vmatprep.subr.mxu0 0.0
  %1494 = vmatpush1.msra.mxu0 0.0
  %1495 = vmatprep.subr.mxu0 0.0
  %1496 = vmatpush1.msra.mxu0 0.0
  %1497 = vmatprep.subr.mxu0 0.0
  %1498 = vmatpush1.msra.mxu0 0.0
  %1499 = vmatprep.subr.mxu0 0.0
  %1500 = vmatpush1.msra.mxu0 0.0
  %1501 = vmatprep.subr.mxu0 0.0
  %1502 = vmatpush1.msra.mxu0 0.0
  %1503 = vmatprep.subr.mxu0 0.0
  %1504 = vmatpush1.msra.mxu0 0.0
  %1505 = vmatprep.subr.mxu0 0.0
  %1506 = vmatpush1.msra.mxu0 0.0
  %1507 = vmatprep.subr.mxu0 0.0
  %1508 = vmatpush1.msra.mxu0 0.0
  %1509 = vmatprep.subr.mxu0 0.0
  %1510 = vmatpush1.msra.mxu0 0.0
  %1511 = vmatprep.subr.mxu0 0.0
  %1512 = vmatpush1.msra.mxu0 0.0
  %1513 = vmatprep.subr.mxu0 0.0
  %1514 = vmatpush1.msra.mxu0 0.0
  %1515 = vmatprep.subr.mxu0 0.0
  %1516 = vmatpush1.msra.mxu0 0.0
  %1517 = vmatprep.mubr.f32.mxu0 0.0
  %1518 = vmatmul.mubr.f32.gmra.mrb[0].mxu0 %v1238
  %v1519 = vpop.f32.mrb[0].mxu0
  %v1520 = vadd.f32 0.0, %v1519
  %v1521 = vpop.f32.mrb[0].mxu0
  %v1522 = vadd.f32 0.0, %v1521
  %1523 = vdwg.mxu0
  %v1525 = vsel %vm36, %v1234, 0
  %1527 = vmatprep.subr.mxu0 %v379
  %1528 = vmatpush1.msra.mxu0 %v378
  %1529 = vmatprep.subr.mxu0 %v387
  %1530 = vmatpush1.msra.mxu0 %v386
  %1531 = vmatprep.subr.mxu0 0.0
  %1532 = vmatpush1.msra.mxu0 0.0
  %1533 = vmatprep.subr.mxu0 0.0
  %1534 = vmatpush1.msra.mxu0 0.0
  %1535 = vmatprep.subr.mxu0 0.0
  %1536 = vmatpush1.msra.mxu0 0.0
  %1537 = vmatprep.subr.mxu0 0.0
  %1538 = vmatpush1.msra.mxu0 0.0
  %1539 = vmatprep.subr.mxu0 0.0
  %1540 = vmatpush1.msra.mxu0 0.0
  %1541 = vmatprep.subr.mxu0 0.0
  %1542 = vmatpush1.msra.mxu0 0.0
  %1543 = vmatprep.subr.mxu0 0.0
  %1544 = vmatpush1.msra.mxu0 0.0
  %1545 = vmatprep.subr.mxu0 0.0
  %1546 = vmatpush1.msra.mxu0 0.0
  %1547 = vmatprep.subr.mxu0 0.0
  %1548 = vmatpush1.msra.mxu0 0.0
  %1549 = vmatprep.subr.mxu0 0.0
  %1550 = vmatpush1.msra.mxu0 0.0
  %1551 = vmatprep.subr.mxu0 0.0
  %1552 = vmatpush1.msra.mxu0 0.0
  %1553 = vmatprep.subr.mxu0 0.0
  %1554 = vmatpush1.msra.mxu0 0.0
  %1555 = vmatprep.subr.mxu0 0.0
  %1556 = vmatpush1.msra.mxu0 0.0
  %1557 = vmatprep.subr.mxu0 0.0
  %1558 = vmatpush1.msra.mxu0 0.0
  %1559 = vmatprep.subr.mxu0 0.0
  %1560 = vmatpush1.msra.mxu0 0.0
  %1561 = vmatprep.subr.mxu0 0.0
  %1562 = vmatpush1.msra.mxu0 0.0
  %1563 = vmatprep.subr.mxu0 0.0
  %1564 = vmatpush1.msra.mxu0 0.0
  %1565 = vmatprep.subr.mxu0 0.0
  %1566 = vmatpush1.msra.mxu0 0.0
  %1567 = vmatprep.subr.mxu0 0.0
  %1568 = vmatpush1.msra.mxu0 0.0
  %1569 = vmatprep.subr.mxu0 0.0
  %1570 = vmatpush1.msra.mxu0 0.0
  %1571 = vmatprep.subr.mxu0 0.0
  %1572 = vmatpush1.msra.mxu0 0.0
  %1573 = vmatprep.subr.mxu0 0.0
  %1574 = vmatpush1.msra.mxu0 0.0
  %1575 = vmatprep.subr.mxu0 0.0
  %1576 = vmatpush1.msra.mxu0 0.0
  %1577 = vmatprep.subr.mxu0 0.0
  %1578 = vmatpush1.msra.mxu0 0.0
  %1579 = vmatprep.subr.mxu0 0.0
  %1580 = vmatpush1.msra.mxu0 0.0
  %1581 = vmatprep.subr.mxu0 0.0
  %1582 = vmatpush1.msra.mxu0 0.0
  %1583 = vmatprep.subr.mxu0 0.0
  %1584 = vmatpush1.msra.mxu0 0.0
  %1585 = vmatprep.subr.mxu0 0.0
  %1586 = vmatpush1.msra.mxu0 0.0
  %1587 = vmatprep.subr.mxu0 0.0
  %1588 = vmatpush1.msra.mxu0 0.0
  %1589 = vmatprep.subr.mxu0 0.0
  %1590 = vmatpush1.msra.mxu0 0.0
  %1591 = vmatprep.mubr.f32.mxu0 0.0
  %1592 = vmatmul.mubr.f32.gmra.mrb[0].mxu0 %v1525
  %v1593 = vpop.f32.mrb[0].mxu0
  %v1594 = vadd.f32 %v1307, %v1593
  %v1595 = vpop.f32.mrb[0].mxu0
  %v1596 = vadd.f32 %v1309, %v1595
  %1597 = vdwg.mxu0
  %1598 = vmatprep.subr.mxu0 %v381
  %1599 = vmatpush1.msra.mxu0 %v380
  %1600 = vmatprep.subr.mxu0 %v389
  %1601 = vmatpush1.msra.mxu0 %v388
  %1602 = vmatprep.subr.mxu0 0.0
  %1603 = vmatpush1.msra.mxu0 0.0
  %1604 = vmatprep.subr.mxu0 0.0
  %1605 = vmatpush1.msra.mxu0 0.0
  %1606 = vmatprep.subr.mxu0 0.0
  %1607 = vmatpush1.msra.mxu0 0.0
  %1608 = vmatprep.subr.mxu0 0.0
  %1609 = vmatpush1.msra.mxu0 0.0
  %1610 = vmatprep.subr.mxu0 0.0
  %1611 = vmatpush1.msra.mxu0 0.0
  %1612 = vmatprep.subr.mxu0 0.0
  %1613 = vmatpush1.msra.mxu0 0.0
  %1614 = vmatprep.subr.mxu0 0.0
  %1615 = vmatpush1.msra.mxu0 0.0
  %1616 = vmatprep.subr.mxu0 0.0
  %1617 = vmatpush1.msra.mxu0 0.0
  %1618 = vmatprep.subr.mxu0 0.0
  %1619 = vmatpush1.msra.mxu0 0.0
  %1620 = vmatprep.subr.mxu0 0.0
  %1621 = vmatpush1.msra.mxu0 0.0
  %1622 = vmatprep.subr.mxu0 0.0
  %1623 = vmatpush1.msra.mxu0 0.0
  %1624 = vmatprep.subr.mxu0 0.0
  %1625 = vmatpush1.msra.mxu0 0.0
  %1626 = vmatprep.subr.mxu0 0.0
  %1627 = vmatpush1.msra.mxu0 0.0
  %1628 = vmatprep.subr.mxu0 0.0
  %1629 = vmatpush1.msra.mxu0 0.0
  %1630 = vmatprep.subr.mxu0 0.0
  %1631 = vmatpush1.msra.mxu0 0.0
  %1632 = vmatprep.subr.mxu0 0.0
  %1633 = vmatpush1.msra.mxu0 0.0
  %1634 = vmatprep.subr.mxu0 0.0
  %1635 = vmatpush1.msra.mxu0 0.0
  %1636 = vmatprep.subr.mxu0 0.0
  %1637 = vmatpush1.msra.mxu0 0.0
  %1638 = vmatprep.subr.mxu0 0.0
  %1639 = vmatpush1.msra.mxu0 0.0
  %1640 = vmatprep.subr.mxu0 0.0
  %1641 = vmatpush1.msra.mxu0 0.0
  %1642 = vmatprep.subr.mxu0 0.0
  %1643 = vmatpush1.msra.mxu0 0.0
  %1644 = vmatprep.subr.mxu0 0.0
  %1645 = vmatpush1.msra.mxu0 0.0
  %1646 = vmatprep.subr.mxu0 0.0
  %1647 = vmatpush1.msra.mxu0 0.0
  %1648 = vmatprep.subr.mxu0 0.0
  %1649 = vmatpush1.msra.mxu0 0.0
  %1650 = vmatprep.subr.mxu0 0.0
  %1651 = vmatpush1.msra.mxu0 0.0
  %1652 = vmatprep.subr.mxu0 0.0
  %1653 = vmatpush1.msra.mxu0 0.0
  %1654 = vmatprep.subr.mxu0 0.0
  %1655 = vmatpush1.msra.mxu0 0.0
  %1656 = vmatprep.subr.mxu0 0.0
  %1657 = vmatpush1.msra.mxu0 0.0
  %1658 = vmatprep.subr.mxu0 0.0
  %1659 = vmatpush1.msra.mxu0 0.0
  %1660 = vmatprep.subr.mxu0 0.0
  %1661 = vmatpush1.msra.mxu0 0.0
  %1662 = vmatprep.mubr.f32.mxu0 0.0
  %1663 = vmatmul.mubr.f32.gmra.mrb[0].mxu0 %v1525
  %v1664 = vpop.f32.mrb[0].mxu0
  %v1665 = vadd.f32 %v1378, %v1664
  %v1666 = vpop.f32.mrb[0].mxu0
  %v1667 = vadd.f32 %v1380, %v1666
  %1668 = vdwg.mxu0
  %1669 = vmatprep.subr.mxu0 %v383
  %1670 = vmatpush1.msra.mxu0 %v382
  %1671 = vmatprep.subr.mxu0 %v391
  %1672 = vmatpush1.msra.mxu0 %v390
  %1673 = vmatprep.subr.mxu0 0.0
  %1674 = vmatpush1.msra.mxu0 0.0
  %1675 = vmatprep.subr.mxu0 0.0
  %1676 = vmatpush1.msra.mxu0 0.0
  %1677 = vmatprep.subr.mxu0 0.0
  %1678 = vmatpush1.msra.mxu0 0.0
  %1679 = vmatprep.subr.mxu0 0.0
  %1680 = vmatpush1.msra.mxu0 0.0
  %1681 = vmatprep.subr.mxu0 0.0
  %1682 = vmatpush1.msra.mxu0 0.0
  %1683 = vmatprep.subr.mxu0 0.0
  %1684 = vmatpush1.msra.mxu0 0.0
  %1685 = vmatprep.subr.mxu0 0.0
  %1686 = vmatpush1.msra.mxu0 0.0
  %1687 = vmatprep.subr.mxu0 0.0
  %1688 = vmatpush1.msra.mxu0 0.0
  %1689 = vmatprep.subr.mxu0 0.0
  %1690 = vmatpush1.msra.mxu0 0.0
  %1691 = vmatprep.subr.mxu0 0.0
  %1692 = vmatpush1.msra.mxu0 0.0
  %1693 = vmatprep.subr.mxu0 0.0
  %1694 = vmatpush1.msra.mxu0 0.0
  %1695 = vmatprep.subr.mxu0 0.0
  %1696 = vmatpush1.msra.mxu0 0.0
  %1697 = vmatprep.subr.mxu0 0.0
  %1698 = vmatpush1.msra.mxu0 0.0
  %1699 = vmatprep.subr.mxu0 0.0
  %1700 = vmatpush1.msra.mxu0 0.0
  %1701 = vmatprep.subr.mxu0 0.0
  %1702 = vmatpush1.msra.mxu0 0.0
  %1703 = vmatprep.subr.mxu0 0.0
  %1704 = vmatpush1.msra.mxu0 0.0
  %1705 = vmatprep.subr.mxu0 0.0
  %1706 = vmatpush1.msra.mxu0 0.0
  %1707 = vmatprep.subr.mxu0 0.0
  %1708 = vmatpush1.msra.mxu0 0.0
  %1709 = vmatprep.subr.mxu0 0.0
  %1710 = vmatpush1.msra.mxu0 0.0
  %1711 = vmatprep.subr.mxu0 0.0
  %1712 = vmatpush1.msra.mxu0 0.0
  %1713 = vmatprep.subr.mxu0 0.0
  %1714 = vmatpush1.msra.mxu0 0.0
  %1715 = vmatprep.subr.mxu0 0.0
  %1716 = vmatpush1.msra.mxu0 0.0
  %1717 = vmatprep.subr.mxu0 0.0
  %1718 = vmatpush1.msra.mxu0 0.0
  %1719 = vmatprep.subr.mxu0 0.0
  %1720 = vmatpush1.msra.mxu0 0.0
  %1721 = vmatprep.subr.mxu0 0.0
  %1722 = vmatpush1.msra.mxu0 0.0
  %1723 = vmatprep.subr.mxu0 0.0
  %1724 = vmatpush1.msra.mxu0 0.0
  %1725 = vmatprep.subr.mxu0 0.0
  %1726 = vmatpush1.msra.mxu0 0.0
  %1727 = vmatprep.subr.mxu0 0.0
  %1728 = vmatpush1.msra.mxu0 0.0
  %1729 = vmatprep.subr.mxu0 0.0
  %1730 = vmatpush1.msra.mxu0 0.0
  %1731 = vmatprep.subr.mxu0 0.0
  %1732 = vmatpush1.msra.mxu0 0.0
  %1733 = vmatprep.mubr.f32.mxu0 0.0
  %1734 = vmatmul.mubr.f32.gmra.mrb[0].mxu0 %v1525
  %v1735 = vpop.f32.mrb[0].mxu0
  %v1736 = vadd.f32 %v1449, %v1735
  %v1737 = vpop.f32.mrb[0].mxu0
  %v1738 = vadd.f32 %v1451, %v1737
  %1739 = vdwg.mxu0
  %1740 = vmatprep.subr.mxu0 %v385
  %1741 = vmatpush1.msra.mxu0 %v384
  %1742 = vmatprep.subr.mxu0 %v393
  %1743 = vmatpush1.msra.mxu0 %v392
  %1744 = vmatprep.subr.mxu0 0.0
  %1745 = vmatpush1.msra.mxu0 0.0
  %1746 = vmatprep.subr.mxu0 0.0
  %1747 = vmatpush1.msra.mxu0 0.0
  %1748 = vmatprep.subr.mxu0 0.0
  %1749 = vmatpush1.msra.mxu0 0.0
  %1750 = vmatprep.subr.mxu0 0.0
  %1751 = vmatpush1.msra.mxu0 0.0
  %1752 = vmatprep.subr.mxu0 0.0
  %1753 = vmatpush1.msra.mxu0 0.0
  %1754 = vmatprep.subr.mxu0 0.0
  %1755 = vmatpush1.msra.mxu0 0.0
  %1756 = vmatprep.subr.mxu0 0.0
  %1757 = vmatpush1.msra.mxu0 0.0
  %1758 = vmatprep.subr.mxu0 0.0
  %1759 = vmatpush1.msra.mxu0 0.0
  %1760 = vmatprep.subr.mxu0 0.0
  %1761 = vmatpush1.msra.mxu0 0.0
  %1762 = vmatprep.subr.mxu0 0.0
  %1763 = vmatpush1.msra.mxu0 0.0
  %1764 = vmatprep.subr.mxu0 0.0
  %1765 = vmatpush1.msra.mxu0 0.0
  %1766 = vmatprep.subr.mxu0 0.0
  %1767 = vmatpush1.msra.mxu0 0.0
  %1768 = vmatprep.subr.mxu0 0.0
  %1769 = vmatpush1.msra.mxu0 0.0
  %1770 = vmatprep.subr.mxu0 0.0
  %1771 = vmatpush1.msra.mxu0 0.0
  %1772 = vmatprep.subr.mxu0 0.0
  %1773 = vmatpush1.msra.mxu0 0.0
  %1774 = vmatprep.subr.mxu0 0.0
  %1775 = vmatpush1.msra.mxu0 0.0
  %1776 = vmatprep.subr.mxu0 0.0
  %1777 = vmatpush1.msra.mxu0 0.0
  %1778 = vmatprep.subr.mxu0 0.0
  %1779 = vmatpush1.msra.mxu0 0.0
  %1780 = vmatprep.subr.mxu0 0.0
  %1781 = vmatpush1.msra.mxu0 0.0
  %1782 = vmatprep.subr.mxu0 0.0
  %1783 = vmatpush1.msra.mxu0 0.0
  %1784 = vmatprep.subr.mxu0 0.0
  %1785 = vmatpush1.msra.mxu0 0.0
  %1786 = vmatprep.subr.mxu0 0.0
  %1787 = vmatpush1.msra.mxu0 0.0
  %1788 = vmatprep.subr.mxu0 0.0
  %1789 = vmatpush1.msra.mxu0 0.0
  %1790 = vmatprep.subr.mxu0 0.0
  %1791 = vmatpush1.msra.mxu0 0.0
  %1792 = vmatprep.subr.mxu0 0.0
  %1793 = vmatpush1.msra.mxu0 0.0
  %1794 = vmatprep.subr.mxu0 0.0
  %1795 = vmatpush1.msra.mxu0 0.0
  %1796 = vmatprep.subr.mxu0 0.0
  %1797 = vmatpush1.msra.mxu0 0.0
  %1798 = vmatprep.subr.mxu0 0.0
  %1799 = vmatpush1.msra.mxu0 0.0
  %1800 = vmatprep.subr.mxu0 0.0
  %1801 = vmatpush1.msra.mxu0 0.0
  %1802 = vmatprep.subr.mxu0 0.0
  %1803 = vmatpush1.msra.mxu0 0.0
  %1804 = vmatprep.mubr.f32.mxu0 0.0
  %1805 = vmatmul.mubr.f32.gmra.mrb[0].mxu0 %v1525
  %v1806 = vpop.f32.mrb[0].mxu0
  %v1807 = vadd.f32 %v1520, %v1806
  %v1808 = vpop.f32.mrb[0].mxu0
  %v1809 = vadd.f32 %v1522, %v1808
  %1810 = vdwg.mxu0
  %v1819 = vcombine.low %v1594, %v1596
  %v1820 = vcombine.low %v1665, %v1667
  %v1821 = vcombine.low %v1736, %v1738
  %v1822 = vcombine.low %v1807, %v1809
  %v1824 = vunpack.c.l.s4 1966171168
  %v1825 = vunpack.c.0.s8 %v1824
  %v1826 = vlaneseq
  %v1827 = vshrl.u32 %v1826, 7
  %v1828 = vsub.s32 %v1825, %v1827
  %v1829 = vrot.slane %v1819, %v1828
  %v1831 = vunpack.c.l.s4 1966171168
  %v1832 = vunpack.c.0.s8 %v1831
  %v1833 = vlaneseq
  %v1834 = vshrl.u32 %v1833, 7
  %v1835 = vsub.s32 %v1832, %v1834
  %v1836 = vrot.slane %v1820, %v1835
  %v1838 = vunpack.c.l.s4 1966171168
  %v1839 = vunpack.c.0.s8 %v1838
  %v1840 = vlaneseq
  %v1841 = vshrl.u32 %v1840, 7
  %v1842 = vsub.s32 %v1839, %v1841
  %v1843 = vrot.slane %v1821, %v1842
  %v1845 = vunpack.c.l.s4 1966171168
  %v1846 = vunpack.c.0.s8 %v1845
  %v1847 = vlaneseq
  %v1848 = vshrl.u32 %v1847, 7
  %v1849 = vsub.s32 %v1846, %v1848
  %v1850 = vrot.slane %v1822, %v1849
  %v1851 = vcombine.low %v1829, %v1836
  %v1852 = vcombine.low %v1843, %v1850
  %v1854 = vunpack.c.l.s4 1966171168
  %v1855 = vunpack.c.0.s8 %v1854
  %v1856 = vlaneseq
  %v1857 = vshrl.u32 %v1856, 7
  %v1858 = vsub.s32 %v1855, %v1857
  %v1859 = vrot.slane %v1851, %v1858
  %v1861 = vunpack.c.l.s4 1966171168
  %v1862 = vunpack.c.0.s8 %v1861
  %v1863 = vlaneseq
  %v1864 = vshrl.u32 %v1863, 7
  %v1865 = vsub.s32 %v1862, %v1864
  %v1866 = vrot.slane %v1852, %v1865
  %v1867 = vcombine.low %v1859, %v1866
  %1869 = vst [vmem:[%s4] sm:$0xff] %v1867
  // Predicated region
  $region18: #{simple_periodic_fc.1} parent=0 // pred_check
    _
  $region19: #{simple_periodic_fc.1} parent=0 // pred_check_branch
    %1871 = sbr.rel (0) target = $region21
  $region20: #{simple_periodic_fc.1} parent=0 // pred_region
    _
  $region21: #{simple_periodic_fc.1} parent=0 // pred_fallthru
    _
  // Predicated region
  $region22: #{simple_periodic_fc.1} parent=0 // pred_check
    _
  $region23: #{simple_periodic_fc.1} parent=0 // pred_check_branch
    %1873 = sbr.rel (0) target = $region25
  $region24: #{simple_periodic_fc.1} parent=0 // pred_region
    _
  $region25: #{simple_periodic_fc.1} parent=0 // pred_fallthru
    _

</llo_original>
